<compile_context>
chip_gen: v7x
topology: tpu7x:2x2x1
jax: 0.10.0
libtpu: 0.0.40
codegen_flags: <defaults>
</compile_context>

<pallas_src>
import functools

import jax
import jax.numpy as jnp
from jax import lax
from jax.experimental import pallas as pl
from jax.experimental.pallas import tpu as pltpu


# ----------------------------- Pallas kernel ------------------------------ #

def _mix_transformer_kernel(H,
                            x_ref,            # (BC, S, E)     f32
                            wqkv_ref,         # (L, E, 3E)     f32 (Q cols pre-scaled)
                            wo_ref,           # (L, E, E)      f32
                            w1_ref,           # (L, E, HID)    f32
                            w2_ref,           # (L, HID, E)    f32
                            bqkv_ref,         # (L, 1, 3E)     f32 (Q part pre-scaled)
                            bf1_ref,          # (L, 1, HID)    f32
                            vec_ref,          # (L, 6, E)      f32: bo,g1,be1,bf2,g2,be2
                            o_ref):           # (BC, S, E)     f32
    BC, S, E = x_ref.shape
    L = wqkv_ref.shape[0]
    D = E // H
    eps = 1e-5

    def layer_norm(a, g, b):                 # f32 LN (VPU + EUP rsqrt)
        mu = jnp.mean(a, axis=-1, keepdims=True)
        var = jnp.mean(jnp.square(a - mu), axis=-1, keepdims=True)
        return (a - mu) * lax.rsqrt(var + eps) * g + b

    # Whole batch-chunk folded into the matmul M dimension.
    x = x_ref[...].reshape(BC * S, E)        # (BC*S, E)

    # Static unroll over layers: fine at L=2.  For larger L switch to
    # lax.fori_loop over the stacked layer axis (bounds vreg live ranges).
    for l in range(L):
        vec = vec_ref[l]                     # (6, E)
        bo, g1, be1 = vec[0:1, :], vec[1:2, :], vec[2:3, :]
        bf2, g2, be2 = vec[3:4, :], vec[4:5, :], vec[5:6, :]

        # ---- fused QKV projection: one MXU push, 3E-wide output ----
        qkv = jnp.dot(x, wqkv_ref[l],
                      preferred_element_type=jnp.float32) + bqkv_ref[l]   # (BC*S, 3E)
        qkv3 = qkv.reshape(BC, S, 3 * E)

        # ---- multi-head self attention: static lane slices per head, ----
        # ---- batched over the folded batch dim (no head transposes).  ----
        ctx_parts = []
        for h in range(H):                   # H = 2: tiny static unroll
            q = qkv3[:, :, h * D:(h + 1) * D]                 # (BC,S,D), scale folded
            k = qkv3[:, :, E + h * D:E + (h + 1) * D]         # (BC,S,D)
            v = qkv3[:, :, 2 * E + h * D:2 * E + (h + 1) * D] # (BC,S,D)
            s = jnp.einsum('bqd,bkd->bqk', q, k,
                           preferred_element_type=jnp.float32)            # (BC,S,S)
            s = s - jnp.max(s, axis=-1, keepdims=True)
            p = jnp.exp(s)
            p = p / jnp.sum(p, axis=-1, keepdims=True)
            ctx_parts.append(jnp.einsum('bqk,bkd->bqd', p, v,
                                        preferred_element_type=jnp.float32))
        ctx = jnp.concatenate(ctx_parts, axis=-1).reshape(BC * S, E)
        attn = jnp.dot(ctx, wo_ref[l],
                       preferred_element_type=jnp.float32) + bo

        # ---- residual + LayerNorm 1 ----
        x = layer_norm(x + attn, g1, be1)

        # ---- feedforward: Linear -> ReLU -> Linear ----
        hid = jnp.dot(x, w1_ref[l],
                      preferred_element_type=jnp.float32) + bf1_ref[l]
        hid = jnp.maximum(hid, 0.0)
        ff = jnp.dot(hid, w2_ref[l],
                     preferred_element_type=jnp.float32) + bf2

        # ---- residual + LayerNorm 2 ----
        x = layer_norm(x + ff, g2, be2)

    o_ref[...] = x.reshape(BC, S, E)


# ------------------------------ packing (once, at init) -------------------- #

def pack_layers(layers, num_heads):
    """Stack per-layer param dicts into a few packed f32 arrays.

    Folds the 1/sqrt(D) attention scale into the Q columns of wqkv / bqkv so
    the kernel never multiplies the score tensor.
    """
    E = layers[0]["wq"].shape[0]
    D = E // num_heads
    scale = 1.0 / float(D) ** 0.5
    wqkv = jnp.stack([jnp.concatenate([p["wq"] * scale, p["wk"], p["wv"]], axis=1)
                      for p in layers])                                   # (L, E, 3E)
    bqkv = jnp.stack([jnp.concatenate([p["bq"] * scale, p["bk"], p["bv"]], axis=1)
                      for p in layers])                                   # (L, 1, 3E)
    wo = jnp.stack([p["wo"] for p in layers])                             # (L, E, E)
    w1 = jnp.stack([p["w1"] for p in layers])                             # (L, E, HID)
    w2 = jnp.stack([p["w2"] for p in layers])                             # (L, HID, E)
    bf1 = jnp.stack([p["bf1"] for p in layers])                           # (L, 1, HID)
    vec = jnp.stack([jnp.concatenate(
        [p["bo"], p["g1"], p["be1"], p["bf2"], p["g2"], p["be2"]], axis=0)
        for p in layers])                                                 # (L, 6, E)
    return wqkv, wo, w1, w2, bqkv, bf1, vec


def pick_batch_chunk(B):
    """Grid-step sizing: one step on single-TC chips, one step per core on
    dual-TC chips.  Falls back to a single step (always correct)."""
    try:
        kind = jax.devices()[0].device_kind.lower()
    except Exception:
        kind = ""
    dual_tc = any(t in kind for t in ("v7", "7x", "v4", "v5p"))
    if dual_tc and B % 2 == 0:
        return B // 2
    return B


# ------------------------------ jitted wrapper ------------------------------ #

@functools.partial(jax.jit, static_argnames=("num_heads", "batch_chunk"))
def mix_transformer_pallas(x_sbe, packed, num_heads, batch_chunk):
    """x_sbe: (S, B, E) in PyTorch MHA layout.  Returns (S, B, E) f32."""
    wqkv, wo, w1, w2, bqkv, bf1, vec = packed
    S, B, E = x_sbe.shape
    L = wqkv.shape[0]
    hidden = w1.shape[2]
    BC = batch_chunk

    x_bse = jnp.transpose(x_sbe, (1, 0, 2))                               # (B, S, E)
    kernel = functools.partial(_mix_transformer_kernel, num_heads)

    def full_spec(shape):
        return pl.BlockSpec(shape, lambda i: (0,) * len(shape))

    out = pl.pallas_call(
        kernel,
        out_shape=jax.ShapeDtypeStruct((B, S, E), jnp.float32),
        grid=(B // BC,),
        in_specs=[
            pl.BlockSpec((BC, S, E), lambda i: (i, 0, 0)),   # activations
            full_spec((L, E, 3 * E)),                        # wqkv (Q pre-scaled)
            full_spec((L, E, E)),                            # wo
            full_spec((L, E, hidden)),                       # w1
            full_spec((L, hidden, E)),                       # w2
            full_spec((L, 1, 3 * E)),                        # bqkv (Q pre-scaled)
            full_spec((L, 1, hidden)),                       # bf1
            full_spec((L, 6, E)),                            # packed bias/gain block
        ],
        out_specs=pl.BlockSpec((BC, S, E), lambda i: (i, 0, 0)),
        compiler_params=pltpu.CompilerParams(
            dimension_semantics=("parallel",)),              # dual-TC: shard steps
    )(x_bse, wqkv, wo, w1, w2, bqkv, bf1, vec)
    return jnp.transpose(out, (1, 0, 2))


# --------------------------- pure-JAX reference ---------------------------- #

def _layer_ref(x2d, p, B, S, H):
    E = x2d.shape[-1]
    D = E // H
    scale = 1.0 / float(D) ** 0.5
    q = x2d @ p["wq"] + p["bq"]
    k = x2d @ p["wk"] + p["bk"]
    v = x2d @ p["wv"] + p["bv"]

    def split(a):  # (B*S, E) -> (B, H, S, D)
        return a.reshape(B, S, H, D).transpose(0, 2, 1, 3)

    qh, kh, vh = split(q), split(k), split(v)
    s = jnp.einsum("bhsd,bhtd->bhst", qh, kh) * scale
    pattn = jax.nn.softmax(s, axis=-1)
    ctx = jnp.einsum("bhst,bhtd->bhsd", pattn, vh)
    ctx = ctx.transpose(0, 2, 1, 3).reshape(B * S, E)
    attn_out = ctx @ p["wo"] + p["bo"]

    def ln(a, g, b):
        mu = jnp.mean(a, axis=-1, keepdims=True)
        var = jnp.mean((a - mu) ** 2, axis=-1, keepdims=True)
        return (a - mu) / jnp.sqrt(var + 1e-5) * g + b

    x1 = ln(x2d + attn_out, p["g1"], p["be1"])
    ff = jnp.maximum(x1 @ p["w1"] + p["bf1"], 0.0) @ p["w2"] + p["bf2"]
    return ln(x1 + ff, p["g2"], p["be2"])


def mix_transformer_ref(x_sbe, layers, num_heads=2):
    S, B, E = x_sbe.shape
    x2d = jnp.transpose(x_sbe, (1, 0, 2)).reshape(B * S, E)
    for p in layers:
        x2d = _layer_ref(x2d, p, B, S, num_heads)
    return jnp.transpose(x2d.reshape(B, S, E), (1, 0, 2))


# ------------------------------ param init --------------------------------- #

def init_params(key, num_layers, E, hidden):
    layers = []
    for _ in range(num_layers):
        key, *ks = jax.random.split(key, 13)

        def nrm(k, shape, scale=0.1):
            return (scale * jax.random.normal(k, shape)).astype(jnp.float32)

        p = dict(
            wq=nrm(ks[0], (E, E)), bq=nrm(ks[1], (1, E)),
            wk=nrm(ks[2], (E, E)), bk=nrm(ks[3], (1, E)),
            wv=nrm(ks[4], (E, E)), bv=nrm(ks[5], (1, E)),
            wo=nrm(ks[6], (E, E)), bo=nrm(ks[7], (1, E)),
            g1=jnp.ones((1, E), jnp.float32), be1=jnp.zeros((1, E), jnp.float32),
            w1=nrm(ks[8], (E, hidden)), bf1=nrm(ks[9], (1, hidden)),
            w2=nrm(ks[10], (hidden, E)), bf2=nrm(ks[11], (1, E)),
            g2=jnp.ones((1, E), jnp.float32), be2=jnp.zeros((1, E), jnp.float32),
        )
        layers.append(p)
    return layers


# --------------------------------- main ------------------------------------ #

if __name__ == "__main__":
    SEQ, BATCH, EMBED = 8, 2, 32
    HIDDEN, NUM_LAYERS, NUM_HEADS = 64, 2, 2

    x = jax.random.normal(jax.random.PRNGKey(0), (SEQ, BATCH, EMBED),
                          dtype=jnp.float32)
    layers = init_params(jax.random.PRNGKey(42), NUM_LAYERS, EMBED, HIDDEN)

    # Packing is done ONCE here (hoisted out of the per-call path).
    packed = pack_layers(layers, NUM_HEADS)
    bc = pick_batch_chunk(BATCH)             # 1 grid step (v5e/v6e) or 2 (v7x/v4/v5p)

    ref = mix_transformer_ref(x, layers, num_heads=NUM_HEADS)

    out = jax.block_until_ready(
        mix_transformer_pallas(x, packed, num_heads=NUM_HEADS, batch_chunk=bc))
    assert out.shape == (SEQ, BATCH, EMBED)
    assert jnp.allclose(out, ref, atol=1e-3, rtol=1e-3), "mismatch vs reference"

    print("KERNEL_OK")
</pallas_src>

<mosaic_0001>
module attributes {stable_mosaic.version = 11 : i64} {
  func.func @_mix_transformer_kernel(%arg0: i32, %arg1: memref<2x8x32xf32, #tpu.memory_space<vmem>>, %arg2: memref<2x32x96xf32, #tpu.memory_space<vmem>>, %arg3: memref<2x32x32xf32, #tpu.memory_space<vmem>>, %arg4: memref<2x32x64xf32, #tpu.memory_space<vmem>>, %arg5: memref<2x64x32xf32, #tpu.memory_space<vmem>>, %arg6: memref<2x1x96xf32, #tpu.memory_space<vmem>>, %arg7: memref<2x1x64xf32, #tpu.memory_space<vmem>>, %arg8: memref<2x6x32xf32, #tpu.memory_space<vmem>>, %arg9: memref<2x8x32xf32, #tpu.memory_space<vmem>>) attributes {dimension_semantics = [#tpu.dimension_semantics<parallel>], iteration_bounds = array<i64: 1>, scalar_prefetch = 0 : i64, scratch_operands = 0 : i64, tpu.core_type = #tpu.core_type<tc>, window_params = [{transform_indices = @transform_0, window_bounds = array<i64: 2, 8, 32>}, {pipeline_mode = #tpu.pipeline_mode<synchronous>, transform_indices = @transform_1, window_bounds = array<i64: 2, 32, 96>}, {pipeline_mode = #tpu.pipeline_mode<synchronous>, transform_indices = @transform_2, window_bounds = array<i64: 2, 32, 32>}, {pipeline_mode = #tpu.pipeline_mode<synchronous>, transform_indices = @transform_3, window_bounds = array<i64: 2, 32, 64>}, {pipeline_mode = #tpu.pipeline_mode<synchronous>, transform_indices = @transform_4, window_bounds = array<i64: 2, 64, 32>}, {pipeline_mode = #tpu.pipeline_mode<synchronous>, transform_indices = @transform_5, window_bounds = array<i64: 2, 1, 96>}, {pipeline_mode = #tpu.pipeline_mode<synchronous>, transform_indices = @transform_6, window_bounds = array<i64: 2, 1, 64>}, {pipeline_mode = #tpu.pipeline_mode<synchronous>, transform_indices = @transform_7, window_bounds = array<i64: 2, 6, 32>}, {transform_indices = @transform_8, window_bounds = array<i64: 2, 8, 32>}]} {
    %c0 = arith.constant 0 : index
    %c0_0 = arith.constant 0 : index
    %c0_1 = arith.constant 0 : index
    %0 = vector.load %arg1[%c0, %c0_0, %c0_1] : memref<2x8x32xf32, #tpu.memory_space<vmem>>, vector<2x8x32xf32>
    %1 = vector.shape_cast %0 : vector<2x8x32xf32> to vector<16x32xf32>
    %c0_2 = arith.constant 0 : index
    %c0_3 = arith.constant 0 : index
    %c0_4 = arith.constant 0 : index
    %2 = vector.load %arg8[%c0_2, %c0_3, %c0_4] : memref<2x6x32xf32, #tpu.memory_space<vmem>>, vector<1x6x32xf32>
    %3 = vector.shape_cast %2 : vector<1x6x32xf32> to vector<6x32xf32>
    %4 = vector.extract_strided_slice %3 {offsets = [0, 0], sizes = [1, 32], strides = [1, 1]} : vector<6x32xf32> to vector<1x32xf32>
    %5 = vector.extract_strided_slice %3 {offsets = [1, 0], sizes = [1, 32], strides = [1, 1]} : vector<6x32xf32> to vector<1x32xf32>
    %6 = vector.extract_strided_slice %3 {offsets = [2, 0], sizes = [1, 32], strides = [1, 1]} : vector<6x32xf32> to vector<1x32xf32>
    %7 = vector.extract_strided_slice %3 {offsets = [3, 0], sizes = [1, 32], strides = [1, 1]} : vector<6x32xf32> to vector<1x32xf32>
    %8 = vector.extract_strided_slice %3 {offsets = [4, 0], sizes = [1, 32], strides = [1, 1]} : vector<6x32xf32> to vector<1x32xf32>
    %9 = vector.extract_strided_slice %3 {offsets = [5, 0], sizes = [1, 32], strides = [1, 1]} : vector<6x32xf32> to vector<1x32xf32>
    %c0_5 = arith.constant 0 : index
    %c0_6 = arith.constant 0 : index
    %c0_7 = arith.constant 0 : index
    %10 = vector.load %arg2[%c0_5, %c0_6, %c0_7] : memref<2x32x96xf32, #tpu.memory_space<vmem>>, vector<1x32x96xf32>
    %11 = vector.shape_cast %10 : vector<1x32x96xf32> to vector<32x96xf32>
    %cst = arith.constant dense<0.000000e+00> : vector<16x96xf32>
    %12 = tpu.matmul %1, %11, %cst {dimension_numbers = #tpu.dot_dimension_numbers<[1], [0], [0], [1], [0, 0, 1, 1], [], []>} : vector<16x32xf32>, vector<32x96xf32>, vector<16x96xf32> -> vector<16x96xf32>
    %c0_8 = arith.constant 0 : index
    %c0_9 = arith.constant 0 : index
    %c0_10 = arith.constant 0 : index
    %13 = vector.load %arg6[%c0_8, %c0_9, %c0_10] : memref<2x1x96xf32, #tpu.memory_space<vmem>>, vector<1x1x96xf32>
    %14 = vector.shape_cast %13 : vector<1x1x96xf32> to vector<1x96xf32>
    %15 = vector.broadcast %14 : vector<1x96xf32> to vector<16x96xf32>
    %16 = arith.addf %12, %15 : vector<16x96xf32>
    %17 = vector.shape_cast %16 : vector<16x96xf32> to vector<2x8x96xf32>
    %18 = vector.extract_strided_slice %17 {offsets = [0, 0, 0], sizes = [2, 8, 16], strides = [1, 1, 1]} : vector<2x8x96xf32> to vector<2x8x16xf32>
    %19 = vector.extract_strided_slice %17 {offsets = [0, 0, 32], sizes = [2, 8, 16], strides = [1, 1, 1]} : vector<2x8x96xf32> to vector<2x8x16xf32>
    %20 = vector.extract_strided_slice %17 {offsets = [0, 0, 64], sizes = [2, 8, 16], strides = [1, 1, 1]} : vector<2x8x96xf32> to vector<2x8x16xf32>
    "tpu.trace_start"() <{level = 10 : i32, message = "bqd,bkd->bqk"}> : () -> ()
    %cst_11 = arith.constant dense<0.000000e+00> : vector<2x8x8xf32>
    %21 = tpu.matmul %18, %19, %cst_11 {dimension_numbers = #tpu.dot_dimension_numbers<[2], [2], [1], [1], [0, 0, 0, 1, 1, 1], [0], [0]>} : vector<2x8x16xf32>, vector<2x8x16xf32>, vector<2x8x8xf32> -> vector<2x8x8xf32>
    "tpu.trace_stop"() : () -> ()
    %cst_12 = arith.constant dense<0xFF800000> : vector<2x8xf32>
    %22 = vector.multi_reduction <maximumf>, %21, %cst_12 [2] : vector<2x8x8xf32> to vector<2x8xf32>
    %23 = vector.shape_cast %22 : vector<2x8xf32> to vector<2x8x1xf32>
    %24 = vector.broadcast %23 : vector<2x8x1xf32> to vector<2x8x8xf32>
    %25 = arith.subf %21, %24 : vector<2x8x8xf32>
    %26 = math.exp %25 : vector<2x8x8xf32>
    %cst_13 = arith.constant dense<0.000000e+00> : vector<2x8xf32>
    %27 = vector.multi_reduction <add>, %26, %cst_13 [2] : vector<2x8x8xf32> to vector<2x8xf32>
    %28 = vector.shape_cast %27 : vector<2x8xf32> to vector<2x8x1xf32>
    %29 = vector.broadcast %28 : vector<2x8x1xf32> to vector<2x8x8xf32>
    %30 = arith.divf %26, %29 : vector<2x8x8xf32>
    "tpu.trace_start"() <{level = 10 : i32, message = "bqk,bkd->bqd"}> : () -> ()
    %cst_14 = arith.constant dense<0.000000e+00> : vector<2x8x16xf32>
    %31 = tpu.matmul %30, %20, %cst_14 {dimension_numbers = #tpu.dot_dimension_numbers<[2], [1], [1], [2], [0, 0, 0, 1, 1, 2], [0], [0]>} : vector<2x8x8xf32>, vector<2x8x16xf32>, vector<2x8x16xf32> -> vector<2x8x16xf32>
    "tpu.trace_stop"() : () -> ()
    %32 = vector.extract_strided_slice %17 {offsets = [0, 0, 16], sizes = [2, 8, 16], strides = [1, 1, 1]} : vector<2x8x96xf32> to vector<2x8x16xf32>
    %33 = vector.extract_strided_slice %17 {offsets = [0, 0, 48], sizes = [2, 8, 16], strides = [1, 1, 1]} : vector<2x8x96xf32> to vector<2x8x16xf32>
    %34 = vector.extract_strided_slice %17 {offsets = [0, 0, 80], sizes = [2, 8, 16], strides = [1, 1, 1]} : vector<2x8x96xf32> to vector<2x8x16xf32>
    "tpu.trace_start"() <{level = 10 : i32, message = "bqd,bkd->bqk"}> : () -> ()
    %cst_15 = arith.constant dense<0.000000e+00> : vector<2x8x8xf32>
    %35 = tpu.matmul %32, %33, %cst_15 {dimension_numbers = #tpu.dot_dimension_numbers<[2], [2], [1], [1], [0, 0, 0, 1, 1, 1], [0], [0]>} : vector<2x8x16xf32>, vector<2x8x16xf32>, vector<2x8x8xf32> -> vector<2x8x8xf32>
    "tpu.trace_stop"() : () -> ()
    %cst_16 = arith.constant dense<0xFF800000> : vector<2x8xf32>
    %36 = vector.multi_reduction <maximumf>, %35, %cst_16 [2] : vector<2x8x8xf32> to vector<2x8xf32>
    %37 = vector.shape_cast %36 : vector<2x8xf32> to vector<2x8x1xf32>
    %38 = vector.broadcast %37 : vector<2x8x1xf32> to vector<2x8x8xf32>
    %39 = arith.subf %35, %38 : vector<2x8x8xf32>
    %40 = math.exp %39 : vector<2x8x8xf32>
    %cst_17 = arith.constant dense<0.000000e+00> : vector<2x8xf32>
    %41 = vector.multi_reduction <add>, %40, %cst_17 [2] : vector<2x8x8xf32> to vector<2x8xf32>
    %42 = vector.shape_cast %41 : vector<2x8xf32> to vector<2x8x1xf32>
    %43 = vector.broadcast %42 : vector<2x8x1xf32> to vector<2x8x8xf32>
    %44 = arith.divf %40, %43 : vector<2x8x8xf32>
    "tpu.trace_start"() <{level = 10 : i32, message = "bqk,bkd->bqd"}> : () -> ()
    %cst_18 = arith.constant dense<0.000000e+00> : vector<2x8x16xf32>
    %45 = tpu.matmul %44, %34, %cst_18 {dimension_numbers = #tpu.dot_dimension_numbers<[2], [1], [1], [2], [0, 0, 0, 1, 1, 2], [0], [0]>} : vector<2x8x8xf32>, vector<2x8x16xf32>, vector<2x8x16xf32> -> vector<2x8x16xf32>
    "tpu.trace_stop"() : () -> ()
    %46 = tpu.concatenate %31, %45 in 2 : vector<2x8x16xf32>, vector<2x8x16xf32> -> vector<2x8x32xf32>
    %47 = vector.shape_cast %46 : vector<2x8x32xf32> to vector<16x32xf32>
    %c0_19 = arith.constant 0 : index
    %c0_20 = arith.constant 0 : index
    %c0_21 = arith.constant 0 : index
    %48 = vector.load %arg3[%c0_19, %c0_20, %c0_21] : memref<2x32x32xf32, #tpu.memory_space<vmem>>, vector<1x32x32xf32>
    %49 = vector.shape_cast %48 : vector<1x32x32xf32> to vector<32x32xf32>
    %cst_22 = arith.constant dense<0.000000e+00> : vector<16x32xf32>
    %50 = tpu.matmul %47, %49, %cst_22 {dimension_numbers = #tpu.dot_dimension_numbers<[1], [0], [0], [1], [0, 0, 1, 1], [], []>} : vector<16x32xf32>, vector<32x32xf32>, vector<16x32xf32> -> vector<16x32xf32>
    %51 = vector.broadcast %4 : vector<1x32xf32> to vector<16x32xf32>
    %52 = arith.addf %50, %51 : vector<16x32xf32>
    %53 = arith.addf %1, %52 : vector<16x32xf32>
    %cst_23 = arith.constant dense<0.000000e+00> : vector<16xf32>
    %54 = vector.multi_reduction <add>, %53, %cst_23 [1] : vector<16x32xf32> to vector<16xf32>
    %55 = vector.shape_cast %54 : vector<16xf32> to vector<16x1xf32>
    %cst_24 = arith.constant 3.200000e+01 : f32
    %56 = vector.broadcast %cst_24 : f32 to vector<16x1xf32>
    %57 = arith.divf %55, %56 : vector<16x1xf32>
    %58 = vector.broadcast %57 : vector<16x1xf32> to vector<16x32xf32>
    %59 = arith.subf %53, %58 : vector<16x32xf32>
    %60 = arith.mulf %59, %59 : vector<16x32xf32>
    %cst_25 = arith.constant dense<0.000000e+00> : vector<16xf32>
    %61 = vector.multi_reduction <add>, %60, %cst_25 [1] : vector<16x32xf32> to vector<16xf32>
    %62 = vector.shape_cast %61 : vector<16xf32> to vector<16x1xf32>
    %cst_26 = arith.constant 3.200000e+01 : f32
    %63 = vector.broadcast %cst_26 : f32 to vector<16x1xf32>
    %64 = arith.divf %62, %63 : vector<16x1xf32>
    %65 = vector.broadcast %57 : vector<16x1xf32> to vector<16x32xf32>
    %66 = arith.subf %53, %65 : vector<16x32xf32>
    %cst_27 = arith.constant 9.99999974E-6 : f32
    %67 = vector.broadcast %cst_27 : f32 to vector<16x1xf32>
    %68 = arith.addf %64, %67 : vector<16x1xf32>
    %69 = math.rsqrt %68 : vector<16x1xf32>
    %70 = vector.broadcast %69 : vector<16x1xf32> to vector<16x32xf32>
    %71 = arith.mulf %66, %70 : vector<16x32xf32>
    %72 = vector.broadcast %5 : vector<1x32xf32> to vector<16x32xf32>
    %73 = arith.mulf %71, %72 : vector<16x32xf32>
    %74 = vector.broadcast %6 : vector<1x32xf32> to vector<16x32xf32>
    %75 = arith.addf %73, %74 : vector<16x32xf32>
    %c0_28 = arith.constant 0 : index
    %c0_29 = arith.constant 0 : index
    %c0_30 = arith.constant 0 : index
    %76 = vector.load %arg4[%c0_28, %c0_29, %c0_30] : memref<2x32x64xf32, #tpu.memory_space<vmem>>, vector<1x32x64xf32>
    %77 = vector.shape_cast %76 : vector<1x32x64xf32> to vector<32x64xf32>
    %cst_31 = arith.constant dense<0.000000e+00> : vector<16x64xf32>
    %78 = tpu.matmul %75, %77, %cst_31 {dimension_numbers = #tpu.dot_dimension_numbers<[1], [0], [0], [1], [0, 0, 1, 1], [], []>} : vector<16x32xf32>, vector<32x64xf32>, vector<16x64xf32> -> vector<16x64xf32>
    %c0_32 = arith.constant 0 : index
    %c0_33 = arith.constant 0 : index
    %c0_34 = arith.constant 0 : index
    %79 = vector.load %arg7[%c0_32, %c0_33, %c0_34] : memref<2x1x64xf32, #tpu.memory_space<vmem>>, vector<1x1x64xf32>
    %80 = vector.shape_cast %79 : vector<1x1x64xf32> to vector<1x64xf32>
    %81 = vector.broadcast %80 : vector<1x64xf32> to vector<16x64xf32>
    %82 = arith.addf %78, %81 : vector<16x64xf32>
    %cst_35 = arith.constant 0.000000e+00 : f32
    %83 = vector.broadcast %cst_35 : f32 to vector<16x64xf32>
    %84 = arith.maximumf %82, %83 : vector<16x64xf32>
    %c0_36 = arith.constant 0 : index
    %c0_37 = arith.constant 0 : index
    %c0_38 = arith.constant 0 : index
    %85 = vector.load %arg5[%c0_36, %c0_37, %c0_38] : memref<2x64x32xf32, #tpu.memory_space<vmem>>, vector<1x64x32xf32>
    %86 = vector.shape_cast %85 : vector<1x64x32xf32> to vector<64x32xf32>
    %cst_39 = arith.constant dense<0.000000e+00> : vector<16x32xf32>
    %87 = tpu.matmul %84, %86, %cst_39 {dimension_numbers = #tpu.dot_dimension_numbers<[1], [0], [0], [1], [0, 0, 1, 1], [], []>} : vector<16x64xf32>, vector<64x32xf32>, vector<16x32xf32> -> vector<16x32xf32>
    %88 = vector.broadcast %7 : vector<1x32xf32> to vector<16x32xf32>
    %89 = arith.addf %87, %88 : vector<16x32xf32>
    %90 = arith.addf %75, %89 : vector<16x32xf32>
    %cst_40 = arith.constant dense<0.000000e+00> : vector<16xf32>
    %91 = vector.multi_reduction <add>, %90, %cst_40 [1] : vector<16x32xf32> to vector<16xf32>
    %92 = vector.shape_cast %91 : vector<16xf32> to vector<16x1xf32>
    %cst_41 = arith.constant 3.200000e+01 : f32
    %93 = vector.broadcast %cst_41 : f32 to vector<16x1xf32>
    %94 = arith.divf %92, %93 : vector<16x1xf32>
    %95 = vector.broadcast %94 : vector<16x1xf32> to vector<16x32xf32>
    %96 = arith.subf %90, %95 : vector<16x32xf32>
    %97 = arith.mulf %96, %96 : vector<16x32xf32>
    %cst_42 = arith.constant dense<0.000000e+00> : vector<16xf32>
    %98 = vector.multi_reduction <add>, %97, %cst_42 [1] : vector<16x32xf32> to vector<16xf32>
    %99 = vector.shape_cast %98 : vector<16xf32> to vector<16x1xf32>
    %cst_43 = arith.constant 3.200000e+01 : f32
    %100 = vector.broadcast %cst_43 : f32 to vector<16x1xf32>
    %101 = arith.divf %99, %100 : vector<16x1xf32>
    %102 = vector.broadcast %94 : vector<16x1xf32> to vector<16x32xf32>
    %103 = arith.subf %90, %102 : vector<16x32xf32>
    %cst_44 = arith.constant 9.99999974E-6 : f32
    %104 = vector.broadcast %cst_44 : f32 to vector<16x1xf32>
    %105 = arith.addf %101, %104 : vector<16x1xf32>
    %106 = math.rsqrt %105 : vector<16x1xf32>
    %107 = vector.broadcast %106 : vector<16x1xf32> to vector<16x32xf32>
    %108 = arith.mulf %103, %107 : vector<16x32xf32>
    %109 = vector.broadcast %8 : vector<1x32xf32> to vector<16x32xf32>
    %110 = arith.mulf %108, %109 : vector<16x32xf32>
    %111 = vector.broadcast %9 : vector<1x32xf32> to vector<16x32xf32>
    %112 = arith.addf %110, %111 : vector<16x32xf32>
    %c1 = arith.constant 1 : index
    %c0_45 = arith.constant 0 : index
    %c0_46 = arith.constant 0 : index
    %113 = vector.load %arg8[%c1, %c0_45, %c0_46] : memref<2x6x32xf32, #tpu.memory_space<vmem>>, vector<1x6x32xf32>
    %114 = vector.shape_cast %113 : vector<1x6x32xf32> to vector<6x32xf32>
    %115 = vector.extract_strided_slice %114 {offsets = [0, 0], sizes = [1, 32], strides = [1, 1]} : vector<6x32xf32> to vector<1x32xf32>
    %116 = vector.extract_strided_slice %114 {offsets = [1, 0], sizes = [1, 32], strides = [1, 1]} : vector<6x32xf32> to vector<1x32xf32>
    %117 = vector.extract_strided_slice %114 {offsets = [2, 0], sizes = [1, 32], strides = [1, 1]} : vector<6x32xf32> to vector<1x32xf32>
    %118 = vector.extract_strided_slice %114 {offsets = [3, 0], sizes = [1, 32], strides = [1, 1]} : vector<6x32xf32> to vector<1x32xf32>
    %119 = vector.extract_strided_slice %114 {offsets = [4, 0], sizes = [1, 32], strides = [1, 1]} : vector<6x32xf32> to vector<1x32xf32>
    %120 = vector.extract_strided_slice %114 {offsets = [5, 0], sizes = [1, 32], strides = [1, 1]} : vector<6x32xf32> to vector<1x32xf32>
    %c1_47 = arith.constant 1 : index
    %c0_48 = arith.constant 0 : index
    %c0_49 = arith.constant 0 : index
    %121 = vector.load %arg2[%c1_47, %c0_48, %c0_49] : memref<2x32x96xf32, #tpu.memory_space<vmem>>, vector<1x32x96xf32>
    %122 = vector.shape_cast %121 : vector<1x32x96xf32> to vector<32x96xf32>
    %cst_50 = arith.constant dense<0.000000e+00> : vector<16x96xf32>
    %123 = tpu.matmul %112, %122, %cst_50 {dimension_numbers = #tpu.dot_dimension_numbers<[1], [0], [0], [1], [0, 0, 1, 1], [], []>} : vector<16x32xf32>, vector<32x96xf32>, vector<16x96xf32> -> vector<16x96xf32>
    %c1_51 = arith.constant 1 : index
    %c0_52 = arith.constant 0 : index
    %c0_53 = arith.constant 0 : index
    %124 = vector.load %arg6[%c1_51, %c0_52, %c0_53] : memref<2x1x96xf32, #tpu.memory_space<vmem>>, vector<1x1x96xf32>
    %125 = vector.shape_cast %124 : vector<1x1x96xf32> to vector<1x96xf32>
    %126 = vector.broadcast %125 : vector<1x96xf32> to vector<16x96xf32>
    %127 = arith.addf %123, %126 : vector<16x96xf32>
    %128 = vector.shape_cast %127 : vector<16x96xf32> to vector<2x8x96xf32>
    %129 = vector.extract_strided_slice %128 {offsets = [0, 0, 0], sizes = [2, 8, 16], strides = [1, 1, 1]} : vector<2x8x96xf32> to vector<2x8x16xf32>
    %130 = vector.extract_strided_slice %128 {offsets = [0, 0, 32], sizes = [2, 8, 16], strides = [1, 1, 1]} : vector<2x8x96xf32> to vector<2x8x16xf32>
    %131 = vector.extract_strided_slice %128 {offsets = [0, 0, 64], sizes = [2, 8, 16], strides = [1, 1, 1]} : vector<2x8x96xf32> to vector<2x8x16xf32>
    "tpu.trace_start"() <{level = 10 : i32, message = "bqd,bkd->bqk"}> : () -> ()
    %cst_54 = arith.constant dense<0.000000e+00> : vector<2x8x8xf32>
    %132 = tpu.matmul %129, %130, %cst_54 {dimension_numbers = #tpu.dot_dimension_numbers<[2], [2], [1], [1], [0, 0, 0, 1, 1, 1], [0], [0]>} : vector<2x8x16xf32>, vector<2x8x16xf32>, vector<2x8x8xf32> -> vector<2x8x8xf32>
    "tpu.trace_stop"() : () -> ()
    %cst_55 = arith.constant dense<0xFF800000> : vector<2x8xf32>
    %133 = vector.multi_reduction <maximumf>, %132, %cst_55 [2] : vector<2x8x8xf32> to vector<2x8xf32>
    %134 = vector.shape_cast %133 : vector<2x8xf32> to vector<2x8x1xf32>
    %135 = vector.broadcast %134 : vector<2x8x1xf32> to vector<2x8x8xf32>
    %136 = arith.subf %132, %135 : vector<2x8x8xf32>
    %137 = math.exp %136 : vector<2x8x8xf32>
    %cst_56 = arith.constant dense<0.000000e+00> : vector<2x8xf32>
    %138 = vector.multi_reduction <add>, %137, %cst_56 [2] : vector<2x8x8xf32> to vector<2x8xf32>
    %139 = vector.shape_cast %138 : vector<2x8xf32> to vector<2x8x1xf32>
    %140 = vector.broadcast %139 : vector<2x8x1xf32> to vector<2x8x8xf32>
    %141 = arith.divf %137, %140 : vector<2x8x8xf32>
    "tpu.trace_start"() <{level = 10 : i32, message = "bqk,bkd->bqd"}> : () -> ()
    %cst_57 = arith.constant dense<0.000000e+00> : vector<2x8x16xf32>
    %142 = tpu.matmul %141, %131, %cst_57 {dimension_numbers = #tpu.dot_dimension_numbers<[2], [1], [1], [2], [0, 0, 0, 1, 1, 2], [0], [0]>} : vector<2x8x8xf32>, vector<2x8x16xf32>, vector<2x8x16xf32> -> vector<2x8x16xf32>
    "tpu.trace_stop"() : () -> ()
    %143 = vector.extract_strided_slice %128 {offsets = [0, 0, 16], sizes = [2, 8, 16], strides = [1, 1, 1]} : vector<2x8x96xf32> to vector<2x8x16xf32>
    %144 = vector.extract_strided_slice %128 {offsets = [0, 0, 48], sizes = [2, 8, 16], strides = [1, 1, 1]} : vector<2x8x96xf32> to vector<2x8x16xf32>
    %145 = vector.extract_strided_slice %128 {offsets = [0, 0, 80], sizes = [2, 8, 16], strides = [1, 1, 1]} : vector<2x8x96xf32> to vector<2x8x16xf32>
    "tpu.trace_start"() <{level = 10 : i32, message = "bqd,bkd->bqk"}> : () -> ()
    %cst_58 = arith.constant dense<0.000000e+00> : vector<2x8x8xf32>
    %146 = tpu.matmul %143, %144, %cst_58 {dimension_numbers = #tpu.dot_dimension_numbers<[2], [2], [1], [1], [0, 0, 0, 1, 1, 1], [0], [0]>} : vector<2x8x16xf32>, vector<2x8x16xf32>, vector<2x8x8xf32> -> vector<2x8x8xf32>
    "tpu.trace_stop"() : () -> ()
    %cst_59 = arith.constant dense<0xFF800000> : vector<2x8xf32>
    %147 = vector.multi_reduction <maximumf>, %146, %cst_59 [2] : vector<2x8x8xf32> to vector<2x8xf32>
    %148 = vector.shape_cast %147 : vector<2x8xf32> to vector<2x8x1xf32>
    %149 = vector.broadcast %148 : vector<2x8x1xf32> to vector<2x8x8xf32>
    %150 = arith.subf %146, %149 : vector<2x8x8xf32>
    %151 = math.exp %150 : vector<2x8x8xf32>
    %cst_60 = arith.constant dense<0.000000e+00> : vector<2x8xf32>
    %152 = vector.multi_reduction <add>, %151, %cst_60 [2] : vector<2x8x8xf32> to vector<2x8xf32>
    %153 = vector.shape_cast %152 : vector<2x8xf32> to vector<2x8x1xf32>
    %154 = vector.broadcast %153 : vector<2x8x1xf32> to vector<2x8x8xf32>
    %155 = arith.divf %151, %154 : vector<2x8x8xf32>
    "tpu.trace_start"() <{level = 10 : i32, message = "bqk,bkd->bqd"}> : () -> ()
    %cst_61 = arith.constant dense<0.000000e+00> : vector<2x8x16xf32>
    %156 = tpu.matmul %155, %145, %cst_61 {dimension_numbers = #tpu.dot_dimension_numbers<[2], [1], [1], [2], [0, 0, 0, 1, 1, 2], [0], [0]>} : vector<2x8x8xf32>, vector<2x8x16xf32>, vector<2x8x16xf32> -> vector<2x8x16xf32>
    "tpu.trace_stop"() : () -> ()
    %157 = tpu.concatenate %142, %156 in 2 : vector<2x8x16xf32>, vector<2x8x16xf32> -> vector<2x8x32xf32>
    %158 = vector.shape_cast %157 : vector<2x8x32xf32> to vector<16x32xf32>
    %c1_62 = arith.constant 1 : index
    %c0_63 = arith.constant 0 : index
    %c0_64 = arith.constant 0 : index
    %159 = vector.load %arg3[%c1_62, %c0_63, %c0_64] : memref<2x32x32xf32, #tpu.memory_space<vmem>>, vector<1x32x32xf32>
    %160 = vector.shape_cast %159 : vector<1x32x32xf32> to vector<32x32xf32>
    %cst_65 = arith.constant dense<0.000000e+00> : vector<16x32xf32>
    %161 = tpu.matmul %158, %160, %cst_65 {dimension_numbers = #tpu.dot_dimension_numbers<[1], [0], [0], [1], [0, 0, 1, 1], [], []>} : vector<16x32xf32>, vector<32x32xf32>, vector<16x32xf32> -> vector<16x32xf32>
    %162 = vector.broadcast %115 : vector<1x32xf32> to vector<16x32xf32>
    %163 = arith.addf %161, %162 : vector<16x32xf32>
    %164 = arith.addf %112, %163 : vector<16x32xf32>
    %cst_66 = arith.constant dense<0.000000e+00> : vector<16xf32>
    %165 = vector.multi_reduction <add>, %164, %cst_66 [1] : vector<16x32xf32> to vector<16xf32>
    %166 = vector.shape_cast %165 : vector<16xf32> to vector<16x1xf32>
    %cst_67 = arith.constant 3.200000e+01 : f32
    %167 = vector.broadcast %cst_67 : f32 to vector<16x1xf32>
    %168 = arith.divf %166, %167 : vector<16x1xf32>
    %169 = vector.broadcast %168 : vector<16x1xf32> to vector<16x32xf32>
    %170 = arith.subf %164, %169 : vector<16x32xf32>
    %171 = arith.mulf %170, %170 : vector<16x32xf32>
    %cst_68 = arith.constant dense<0.000000e+00> : vector<16xf32>
    %172 = vector.multi_reduction <add>, %171, %cst_68 [1] : vector<16x32xf32> to vector<16xf32>
    %173 = vector.shape_cast %172 : vector<16xf32> to vector<16x1xf32>
    %cst_69 = arith.constant 3.200000e+01 : f32
    %174 = vector.broadcast %cst_69 : f32 to vector<16x1xf32>
    %175 = arith.divf %173, %174 : vector<16x1xf32>
    %176 = vector.broadcast %168 : vector<16x1xf32> to vector<16x32xf32>
    %177 = arith.subf %164, %176 : vector<16x32xf32>
    %cst_70 = arith.constant 9.99999974E-6 : f32
    %178 = vector.broadcast %cst_70 : f32 to vector<16x1xf32>
    %179 = arith.addf %175, %178 : vector<16x1xf32>
    %180 = math.rsqrt %179 : vector<16x1xf32>
    %181 = vector.broadcast %180 : vector<16x1xf32> to vector<16x32xf32>
    %182 = arith.mulf %177, %181 : vector<16x32xf32>
    %183 = vector.broadcast %116 : vector<1x32xf32> to vector<16x32xf32>
    %184 = arith.mulf %182, %183 : vector<16x32xf32>
    %185 = vector.broadcast %117 : vector<1x32xf32> to vector<16x32xf32>
    %186 = arith.addf %184, %185 : vector<16x32xf32>
    %c1_71 = arith.constant 1 : index
    %c0_72 = arith.constant 0 : index
    %c0_73 = arith.constant 0 : index
    %187 = vector.load %arg4[%c1_71, %c0_72, %c0_73] : memref<2x32x64xf32, #tpu.memory_space<vmem>>, vector<1x32x64xf32>
    %188 = vector.shape_cast %187 : vector<1x32x64xf32> to vector<32x64xf32>
    %cst_74 = arith.constant dense<0.000000e+00> : vector<16x64xf32>
    %189 = tpu.matmul %186, %188, %cst_74 {dimension_numbers = #tpu.dot_dimension_numbers<[1], [0], [0], [1], [0, 0, 1, 1], [], []>} : vector<16x32xf32>, vector<32x64xf32>, vector<16x64xf32> -> vector<16x64xf32>
    %c1_75 = arith.constant 1 : index
    %c0_76 = arith.constant 0 : index
    %c0_77 = arith.constant 0 : index
    %190 = vector.load %arg7[%c1_75, %c0_76, %c0_77] : memref<2x1x64xf32, #tpu.memory_space<vmem>>, vector<1x1x64xf32>
    %191 = vector.shape_cast %190 : vector<1x1x64xf32> to vector<1x64xf32>
    %192 = vector.broadcast %191 : vector<1x64xf32> to vector<16x64xf32>
    %193 = arith.addf %189, %192 : vector<16x64xf32>
    %cst_78 = arith.constant 0.000000e+00 : f32
    %194 = vector.broadcast %cst_78 : f32 to vector<16x64xf32>
    %195 = arith.maximumf %193, %194 : vector<16x64xf32>
    %c1_79 = arith.constant 1 : index
    %c0_80 = arith.constant 0 : index
    %c0_81 = arith.constant 0 : index
    %196 = vector.load %arg5[%c1_79, %c0_80, %c0_81] : memref<2x64x32xf32, #tpu.memory_space<vmem>>, vector<1x64x32xf32>
    %197 = vector.shape_cast %196 : vector<1x64x32xf32> to vector<64x32xf32>
    %cst_82 = arith.constant dense<0.000000e+00> : vector<16x32xf32>
    %198 = tpu.matmul %195, %197, %cst_82 {dimension_numbers = #tpu.dot_dimension_numbers<[1], [0], [0], [1], [0, 0, 1, 1], [], []>} : vector<16x64xf32>, vector<64x32xf32>, vector<16x32xf32> -> vector<16x32xf32>
    %199 = vector.broadcast %118 : vector<1x32xf32> to vector<16x32xf32>
    %200 = arith.addf %198, %199 : vector<16x32xf32>
    %201 = arith.addf %186, %200 : vector<16x32xf32>
    %cst_83 = arith.constant dense<0.000000e+00> : vector<16xf32>
    %202 = vector.multi_reduction <add>, %201, %cst_83 [1] : vector<16x32xf32> to vector<16xf32>
    %203 = vector.shape_cast %202 : vector<16xf32> to vector<16x1xf32>
    %cst_84 = arith.constant 3.200000e+01 : f32
    %204 = vector.broadcast %cst_84 : f32 to vector<16x1xf32>
    %205 = arith.divf %203, %204 : vector<16x1xf32>
    %206 = vector.broadcast %205 : vector<16x1xf32> to vector<16x32xf32>
    %207 = arith.subf %201, %206 : vector<16x32xf32>
    %208 = arith.mulf %207, %207 : vector<16x32xf32>
    %cst_85 = arith.constant dense<0.000000e+00> : vector<16xf32>
    %209 = vector.multi_reduction <add>, %208, %cst_85 [1] : vector<16x32xf32> to vector<16xf32>
    %210 = vector.shape_cast %209 : vector<16xf32> to vector<16x1xf32>
    %cst_86 = arith.constant 3.200000e+01 : f32
    %211 = vector.broadcast %cst_86 : f32 to vector<16x1xf32>
    %212 = arith.divf %210, %211 : vector<16x1xf32>
    %213 = vector.broadcast %205 : vector<16x1xf32> to vector<16x32xf32>
    %214 = arith.subf %201, %213 : vector<16x32xf32>
    %cst_87 = arith.constant 9.99999974E-6 : f32
    %215 = vector.broadcast %cst_87 : f32 to vector<16x1xf32>
    %216 = arith.addf %212, %215 : vector<16x1xf32>
    %217 = math.rsqrt %216 : vector<16x1xf32>
    %218 = vector.broadcast %217 : vector<16x1xf32> to vector<16x32xf32>
    %219 = arith.mulf %214, %218 : vector<16x32xf32>
    %220 = vector.broadcast %119 : vector<1x32xf32> to vector<16x32xf32>
    %221 = arith.mulf %219, %220 : vector<16x32xf32>
    %222 = vector.broadcast %120 : vector<1x32xf32> to vector<16x32xf32>
    %223 = arith.addf %221, %222 : vector<16x32xf32>
    %224 = vector.shape_cast %223 : vector<16x32xf32> to vector<2x8x32xf32>
    %c0_88 = arith.constant 0 : index
    %c0_89 = arith.constant 0 : index
    %c0_90 = arith.constant 0 : index
    %225 = vector.load %arg9[%c0_88, %c0_89, %c0_90] : memref<2x8x32xf32, #tpu.memory_space<vmem>>, vector<2x8x32xf32>
    tpu.vector_store %arg9[%c0_88, %c0_89, %c0_90], %224 {strides = array<i32>} : memref<2x8x32xf32, #tpu.memory_space<vmem>>, vector<2x8x32xf32>,
    return
  }
  func.func @transform_0(%arg0: i32) -> (i32, i32, i32) {
    %c0_i32 = arith.constant 0 : i32
    %c0_i32_0 = arith.constant 0 : i32
    %c0_i32_1 = arith.constant 0 : i32
    return %arg0, %c0_i32, %c0_i32_0 : i32, i32, i32
  }
  func.func @transform_1(%arg0: i32) -> (i32, i32, i32) {
    %c0_i32 = arith.constant 0 : i32
    %c0_i32_0 = arith.constant 0 : i32
    %c0_i32_1 = arith.constant 0 : i32
    %c0_i32_2 = arith.constant 0 : i32
    return %c0_i32, %c0_i32_0, %c0_i32_1 : i32, i32, i32
  }
  func.func @transform_2(%arg0: i32) -> (i32, i32, i32) {
    %c0_i32 = arith.constant 0 : i32
    %c0_i32_0 = arith.constant 0 : i32
    %c0_i32_1 = arith.constant 0 : i32
    %c0_i32_2 = arith.constant 0 : i32
    return %c0_i32, %c0_i32_0, %c0_i32_1 : i32, i32, i32
  }
  func.func @transform_3(%arg0: i32) -> (i32, i32, i32) {
    %c0_i32 = arith.constant 0 : i32
    %c0_i32_0 = arith.constant 0 : i32
    %c0_i32_1 = arith.constant 0 : i32
    %c0_i32_2 = arith.constant 0 : i32
    return %c0_i32, %c0_i32_0, %c0_i32_1 : i32, i32, i32
  }
  func.func @transform_4(%arg0: i32) -> (i32, i32, i32) {
    %c0_i32 = arith.constant 0 : i32
    %c0_i32_0 = arith.constant 0 : i32
    %c0_i32_1 = arith.constant 0 : i32
    %c0_i32_2 = arith.constant 0 : i32
    return %c0_i32, %c0_i32_0, %c0_i32_1 : i32, i32, i32
  }
  func.func @transform_5(%arg0: i32) -> (i32, i32, i32) {
    %c0_i32 = arith.constant 0 : i32
    %c0_i32_0 = arith.constant 0 : i32
    %c0_i32_1 = arith.constant 0 : i32
    %c0_i32_2 = arith.constant 0 : i32
    return %c0_i32, %c0_i32_0, %c0_i32_1 : i32, i32, i32
  }
  func.func @transform_6(%arg0: i32) -> (i32, i32, i32) {
    %c0_i32 = arith.constant 0 : i32
    %c0_i32_0 = arith.constant 0 : i32
    %c0_i32_1 = arith.constant 0 : i32
    %c0_i32_2 = arith.constant 0 : i32
    return %c0_i32, %c0_i32_0, %c0_i32_1 : i32, i32, i32
  }
  func.func @transform_7(%arg0: i32) -> (i32, i32, i32) {
    %c0_i32 = arith.constant 0 : i32
    %c0_i32_0 = arith.constant 0 : i32
    %c0_i32_1 = arith.constant 0 : i32
    %c0_i32_2 = arith.constant 0 : i32
    return %c0_i32, %c0_i32_0, %c0_i32_1 : i32, i32, i32
  }
  func.func @transform_8(%arg0: i32) -> (i32, i32, i32) {
    %c0_i32 = arith.constant 0 : i32
    %c0_i32_0 = arith.constant 0 : i32
    %c0_i32_1 = arith.constant 0 : i32
    return %arg0, %c0_i32, %c0_i32_0 : i32, i32, i32
  }
}

</mosaic_0001>

<llo_original>
// kernel: mix_transformer_pallas.1
$region0: #{mix_transformer_pallas.1}
  #allocation0 [shape = 'u32[]', space=smem, size = 0x4, offset = 0x4, fixed_abs, tag = 'smem constant byte address 0x4 - core index']
  #allocation1 [shape = 'u32[144,128]{1,0:T(1,128)}', space=vmem, size = 0x12000, scoped, tag = 'internal scratch']
  %s0 = inlined_call_operand.vmem [shape: f32[2,8,32], index: 0, kind: input, shape index: {}]
  %s1 = inlined_call_operand.vmem [shape: f32[2,32,96], index: 1, kind: input, shape index: {}]
  %s2 = inlined_call_operand.vmem [shape: f32[2,32,32], index: 2, kind: input, shape index: {}]
  %s3 = inlined_call_operand.vmem [shape: f32[2,32,64], index: 3, kind: input, shape index: {}]
  %s4 = inlined_call_operand.vmem [shape: f32[2,64,32], index: 4, kind: input, shape index: {}]
  %s5 = inlined_call_operand.vmem [shape: f32[2,1,96], index: 5, kind: input, shape index: {}]
  %s6 = inlined_call_operand.vmem [shape: f32[2,1,64], index: 6, kind: input, shape index: {}]
  %s7 = inlined_call_operand.vmem [shape: f32[2,6,32], index: 7, kind: input, shape index: {}]
  %s8 = inlined_call_operand.vmem [shape: f32[2,8,32], index: 8, kind: output, shape index: {}]
  %s9 = sld [smem:[#allocation0]]
  $region42: #{mix_transformer_pallas.1} parent=0
    _
  %s11 = ssub.s32 1, %s9
  %s12 = scalar_select 0, %s11, %s9
  // Predicated region
  $region2: #{mix_transformer_pallas.1} parent=0 // pred_check
    _
  $region3: #{mix_transformer_pallas.1} parent=0 // pred_check_branch
    %14 = sbr.rel (0) target = $region5
  $region4: #{mix_transformer_pallas.1} parent=0 // pred_region
    _
  $region5: #{mix_transformer_pallas.1} parent=0 // pred_fallthru
    _
  // Predicated region
  $region6: #{mix_transformer_pallas.1} parent=0 // pred_check
    _
  $region7: #{mix_transformer_pallas.1} parent=0 // pred_check_branch
    %16 = sbr.rel (0) target = $region9
  $region8: #{mix_transformer_pallas.1} parent=0 // pred_region
    _
  $region9: #{mix_transformer_pallas.1} parent=0 // pred_fallthru
    _
  // Predicated region
  $region10: #{mix_transformer_pallas.1} parent=0 // pred_check
    _
  $region11: #{mix_transformer_pallas.1} parent=0 // pred_check_branch
    %18 = sbr.rel (0) target = $region13
  $region12: #{mix_transformer_pallas.1} parent=0 // pred_region
    _
  $region13: #{mix_transformer_pallas.1} parent=0 // pred_fallthru
    _
  // Predicated region
  $region14: #{mix_transformer_pallas.1} parent=0 // pred_check
    _
  $region15: #{mix_transformer_pallas.1} parent=0 // pred_check_branch
    %20 = sbr.rel (0) target = $region17
  $region16: #{mix_transformer_pallas.1} parent=0 // pred_region
    _
  $region17: #{mix_transformer_pallas.1} parent=0 // pred_fallthru
    _
  // Predicated region
  $region18: #{mix_transformer_pallas.1} parent=0 // pred_check
    _
  $region19: #{mix_transformer_pallas.1} parent=0 // pred_check_branch
    %22 = sbr.rel (0) target = $region21
  $region20: #{mix_transformer_pallas.1} parent=0 // pred_region
    _
  $region21: #{mix_transformer_pallas.1} parent=0 // pred_fallthru
    _
  // Predicated region
  $region22: #{mix_transformer_pallas.1} parent=0 // pred_check
    _
  $region23: #{mix_transformer_pallas.1} parent=0 // pred_check_branch
    %24 = sbr.rel (0) target = $region25
  $region24: #{mix_transformer_pallas.1} parent=0 // pred_region
    _
  $region25: #{mix_transformer_pallas.1} parent=0 // pred_fallthru
    _
  // Predicated region
  $region26: #{mix_transformer_pallas.1} parent=0 // pred_check
    _
  $region27: #{mix_transformer_pallas.1} parent=0 // pred_check_branch
    %26 = sbr.rel (0) target = $region29
  $region28: #{mix_transformer_pallas.1} parent=0 // pred_region
    _
  $region29: #{mix_transformer_pallas.1} parent=0 // pred_fallthru
    _
  // Predicated region
  $region30: #{mix_transformer_pallas.1} parent=0 // pred_check
    _
  $region31: #{mix_transformer_pallas.1} parent=0 // pred_check_branch
    %28 = sbr.rel (0) target = $region33
  $region32: #{mix_transformer_pallas.1} parent=0 // pred_region
    _
  $region33: #{mix_transformer_pallas.1} parent=0 // pred_fallthru
    _
  %v29 = vld [vmem:[%s0] sm:$0xff]
  %v30 = vld [vmem:[%s0 + $0x8] sm:$0xff]
  %v31 = vld [vmem:[%s7] sm:$0x3f]
  %v32 = vld [vmem:[%s1] sm:$0xff]
  %v33 = vld [vmem:[%s1 + $0x8] sm:$0xff]
  %v34 = vld [vmem:[%s1 + $0x10] sm:$0xff]
  %v35 = vld [vmem:[%s1 + $0x18] sm:$0xff]
  %v36 = vld [vmem:[%s5] sm:$0x1]
  %v38 = vlaneseq
  %v39 = vshrl.u32 %v38, 7
  %v40 = vsub.s32 0, %v39
  %v41 = vrot.slane %v36, %v40
  %vm43 = vcmask 261120
  %v45 = vsel %vm43, %v29, 0
  %v48 = vsel %vm43, %v30, 0
  %50 = vmatprep.subr.mxu0 0.0
  %51 = vmatpush1.msra.mxu0 %v32
  %52 = vmatprep.subr.mxu0 0.0
  %53 = vmatpush1.msra.mxu0 %v33
  %54 = vmatprep.subr.mxu0 0.0
  %55 = vmatpush1.msra.mxu0 %v34
  %56 = vmatprep.subr.mxu0 0.0
  %57 = vmatpush1.msra.mxu0 %v35
  %58 = vmatprep.subr.mxu0 0.0
  %59 = vmatpush1.msra.mxu0 0.0
  %60 = vmatprep.subr.mxu0 0.0
  %61 = vmatpush1.msra.mxu0 0.0
  %62 = vmatprep.subr.mxu0 0.0
  %63 = vmatpush1.msra.mxu0 0.0
  %64 = vmatprep.subr.mxu0 0.0
  %65 = vmatpush1.msra.mxu0 0.0
  %66 = vmatprep.subr.mxu0 0.0
  %67 = vmatpush1.msra.mxu0 0.0
  %68 = vmatprep.subr.mxu0 0.0
  %69 = vmatpush1.msra.mxu0 0.0
  %70 = vmatprep.subr.mxu0 0.0
  %71 = vmatpush1.msra.mxu0 0.0
  %72 = vmatprep.subr.mxu0 0.0
  %73 = vmatpush1.msra.mxu0 0.0
  %74 = vmatprep.subr.mxu0 0.0
  %75 = vmatpush1.msra.mxu0 0.0
  %76 = vmatprep.subr.mxu0 0.0
  %77 = vmatpush1.msra.mxu0 0.0
  %78 = vmatprep.subr.mxu0 0.0
  %79 = vmatpush1.msra.mxu0 0.0
  %80 = vmatprep.subr.mxu0 0.0
  %81 = vmatpush1.msra.mxu0 0.0
  %82 = vmatprep.subr.mxu0 0.0
  %83 = vmatpush1.msra.mxu0 0.0
  %84 = vmatprep.subr.mxu0 0.0
  %85 = vmatpush1.msra.mxu0 0.0
  %86 = vmatprep.subr.mxu0 0.0
  %87 = vmatpush1.msra.mxu0 0.0
  %88 = vmatprep.subr.mxu0 0.0
  %89 = vmatpush1.msra.mxu0 0.0
  %90 = vmatprep.subr.mxu0 0.0
  %91 = vmatpush1.msra.mxu0 0.0
  %92 = vmatprep.subr.mxu0 0.0
  %93 = vmatpush1.msra.mxu0 0.0
  %94 = vmatprep.subr.mxu0 0.0
  %95 = vmatpush1.msra.mxu0 0.0
  %96 = vmatprep.subr.mxu0 0.0
  %97 = vmatpush1.msra.mxu0 0.0
  %98 = vmatprep.subr.mxu0 0.0
  %99 = vmatpush1.msra.mxu0 0.0
  %100 = vmatprep.subr.mxu0 0.0
  %101 = vmatpush1.msra.mxu0 0.0
  %102 = vmatprep.subr.mxu0 0.0
  %103 = vmatpush1.msra.mxu0 0.0
  %104 = vmatprep.subr.mxu0 0.0
  %105 = vmatpush1.msra.mxu0 0.0
  %106 = vmatprep.subr.mxu0 0.0
  %107 = vmatpush1.msra.mxu0 0.0
  %108 = vmatprep.subr.mxu0 0.0
  %109 = vmatpush1.msra.mxu0 0.0
  %110 = vmatprep.subr.mxu0 0.0
  %111 = vmatpush1.msra.mxu0 0.0
  %112 = vmatprep.subr.mxu0 0.0
  %113 = vmatpush1.msra.mxu0 0.0
  %114 = vmatprep.mubr.f32.mxu0 0.0
  %115 = vmatmul.mubr.f32.gmra.mrb[0].mxu0 %v45
  %v116 = vpop.f32.mrb[0].mxu0
  %v117 = vadd.f32 %v41, %v116
  %v118 = vpop.f32.mrb[0].mxu0
  %119 = vmatprep.mubr.f32.mxu0 0.0
  %120 = vmatmul.mubr.f32.gmra.mrb[0].mxu0 %v48
  %v121 = vpop.f32.mrb[0].mxu0
  %v122 = vadd.f32 %v41, %v121
  %v123 = vpop.f32.mrb[0].mxu0
  %124 = vdwg.mxu0
  %126 = vrot.lane.b32.xlu0 %v117, 96
  %v127 = vpop.permute.xlu0 %126
  %vm128 = vcmask 130048
  %v129 = vsel %vm128, %v117, 0
  %v131 = vsel %vm128, %v127, 0
  %133 = vmatprep.subr.mxu0 0.0
  %134 = vmatpush1.xpose.msra.mxu0 %v131
  %135 = vmatprep.subr.mxu0 0.0
  %136 = vmatpush1.xpose.msra.mxu0 0.0
  %137 = vmatprep.subr.mxu0 0.0
  %138 = vmatpush1.xpose.msra.mxu0 0.0
  %139 = vmatprep.subr.mxu0 0.0
  %140 = vmatpush1.xpose.msra.mxu0 0.0
  %141 = vmatprep.subr.mxu0 0.0
  %142 = vmatpush1.xpose.msra.mxu0 0.0
  %143 = vmatprep.subr.mxu0 0.0
  %144 = vmatpush1.xpose.msra.mxu0 0.0
  %145 = vmatprep.subr.mxu0 0.0
  %146 = vmatpush1.xpose.msra.mxu0 0.0
  %147 = vmatprep.subr.mxu0 0.0
  %148 = vmatpush1.xpose.msra.mxu0 0.0
  %149 = vmatprep.subr.mxu0 0.0
  %150 = vmatpush1.xpose.msra.mxu0 0.0
  %151 = vmatprep.subr.mxu0 0.0
  %152 = vmatpush1.xpose.msra.mxu0 0.0
  %153 = vmatprep.subr.mxu0 0.0
  %154 = vmatpush1.xpose.msra.mxu0 0.0
  %155 = vmatprep.subr.mxu0 0.0
  %156 = vmatpush1.xpose.msra.mxu0 0.0
  %157 = vmatprep.subr.mxu0 0.0
  %158 = vmatpush1.xpose.msra.mxu0 0.0
  %159 = vmatprep.subr.mxu0 0.0
  %160 = vmatpush1.xpose.msra.mxu0 0.0
  %161 = vmatprep.subr.mxu0 0.0
  %162 = vmatpush1.xpose.msra.mxu0 0.0
  %163 = vmatprep.subr.mxu0 0.0
  %164 = vmatpush1.xpose.msra.mxu0 0.0
  %165 = vmatprep.subr.mxu0 0.0
  %166 = vmatpush1.xpose.msra.mxu0 0.0
  %167 = vmatprep.subr.mxu0 0.0
  %168 = vmatpush1.xpose.msra.mxu0 0.0
  %169 = vmatprep.subr.mxu0 0.0
  %170 = vmatpush1.xpose.msra.mxu0 0.0
  %171 = vmatprep.subr.mxu0 0.0
  %172 = vmatpush1.xpose.msra.mxu0 0.0
  %173 = vmatprep.subr.mxu0 0.0
  %174 = vmatpush1.xpose.msra.mxu0 0.0
  %175 = vmatprep.subr.mxu0 0.0
  %176 = vmatpush1.xpose.msra.mxu0 0.0
  %177 = vmatprep.subr.mxu0 0.0
  %178 = vmatpush1.xpose.msra.mxu0 0.0
  %179 = vmatprep.subr.mxu0 0.0
  %180 = vmatpush1.xpose.msra.mxu0 0.0
  %181 = vmatprep.subr.mxu0 0.0
  %182 = vmatpush1.xpose.msra.mxu0 0.0
  %183 = vmatprep.subr.mxu0 0.0
  %184 = vmatpush1.xpose.msra.mxu0 0.0
  %185 = vmatprep.subr.mxu0 0.0
  %186 = vmatpush1.xpose.msra.mxu0 0.0
  %187 = vmatprep.subr.mxu0 0.0
  %188 = vmatpush1.xpose.msra.mxu0 0.0
  %189 = vmatprep.subr.mxu0 0.0
  %190 = vmatpush1.xpose.msra.mxu0 0.0
  %191 = vmatprep.subr.mxu0 0.0
  %192 = vmatpush1.xpose.msra.mxu0 0.0
  %193 = vmatprep.subr.mxu0 0.0
  %194 = vmatpush1.xpose.msra.mxu0 0.0
  %195 = vmatprep.subr.mxu0 0.0
  %196 = vmatpush1.xpose.msra.mxu0 0.0
  %197 = vmatprep.mubr.f32.mxu0 0.0
  %198 = vmatmul.mubr.f32.gmra.mrb[0].mxu0 %v129
  %v199 = vpop.f32.mrb[0].mxu0
  %v200 = vadd.f32 0.0, %v199
  %v201 = vpop.f32.mrb[0].mxu0
  %202 = vdwg.mxu0
  %204 = vrot.lane.b32.xlu0 %v122, 96
  %v205 = vpop.permute.xlu0 %204
  %v206 = vsel %vm128, %v122, 0
  %v208 = vsel %vm128, %v205, 0
  %210 = vmatprep.subr.mxu0 0.0
  %211 = vmatpush1.xpose.msra.mxu0 %v208
  %212 = vmatprep.subr.mxu0 0.0
  %213 = vmatpush1.xpose.msra.mxu0 0.0
  %214 = vmatprep.subr.mxu0 0.0
  %215 = vmatpush1.xpose.msra.mxu0 0.0
  %216 = vmatprep.subr.mxu0 0.0
  %217 = vmatpush1.xpose.msra.mxu0 0.0
  %218 = vmatprep.subr.mxu0 0.0
  %219 = vmatpush1.xpose.msra.mxu0 0.0
  %220 = vmatprep.subr.mxu0 0.0
  %221 = vmatpush1.xpose.msra.mxu0 0.0
  %222 = vmatprep.subr.mxu0 0.0
  %223 = vmatpush1.xpose.msra.mxu0 0.0
  %224 = vmatprep.subr.mxu0 0.0
  %225 = vmatpush1.xpose.msra.mxu0 0.0
  %226 = vmatprep.subr.mxu0 0.0
  %227 = vmatpush1.xpose.msra.mxu0 0.0
  %228 = vmatprep.subr.mxu0 0.0
  %229 = vmatpush1.xpose.msra.mxu0 0.0
  %230 = vmatprep.subr.mxu0 0.0
  %231 = vmatpush1.xpose.msra.mxu0 0.0
  %232 = vmatprep.subr.mxu0 0.0
  %233 = vmatpush1.xpose.msra.mxu0 0.0
  %234 = vmatprep.subr.mxu0 0.0
  %235 = vmatpush1.xpose.msra.mxu0 0.0
  %236 = vmatprep.subr.mxu0 0.0
  %237 = vmatpush1.xpose.msra.mxu0 0.0
  %238 = vmatprep.subr.mxu0 0.0
  %239 = vmatpush1.xpose.msra.mxu0 0.0
  %240 = vmatprep.subr.mxu0 0.0
  %241 = vmatpush1.xpose.msra.mxu0 0.0
  %242 = vmatprep.subr.mxu0 0.0
  %243 = vmatpush1.xpose.msra.mxu0 0.0
  %244 = vmatprep.subr.mxu0 0.0
  %245 = vmatpush1.xpose.msra.mxu0 0.0
  %246 = vmatprep.subr.mxu0 0.0
  %247 = vmatpush1.xpose.msra.mxu0 0.0
  %248 = vmatprep.subr.mxu0 0.0
  %249 = vmatpush1.xpose.msra.mxu0 0.0
  %250 = vmatprep.subr.mxu0 0.0
  %251 = vmatpush1.xpose.msra.mxu0 0.0
  %252 = vmatprep.subr.mxu0 0.0
  %253 = vmatpush1.xpose.msra.mxu0 0.0
  %254 = vmatprep.subr.mxu0 0.0
  %255 = vmatpush1.xpose.msra.mxu0 0.0
  %256 = vmatprep.subr.mxu0 0.0
  %257 = vmatpush1.xpose.msra.mxu0 0.0
  %258 = vmatprep.subr.mxu0 0.0
  %259 = vmatpush1.xpose.msra.mxu0 0.0
  %260 = vmatprep.subr.mxu0 0.0
  %261 = vmatpush1.xpose.msra.mxu0 0.0
  %262 = vmatprep.subr.mxu0 0.0
  %263 = vmatpush1.xpose.msra.mxu0 0.0
  %264 = vmatprep.subr.mxu0 0.0
  %265 = vmatpush1.xpose.msra.mxu0 0.0
  %266 = vmatprep.subr.mxu0 0.0
  %267 = vmatpush1.xpose.msra.mxu0 0.0
  %268 = vmatprep.subr.mxu0 0.0
  %269 = vmatpush1.xpose.msra.mxu0 0.0
  %270 = vmatprep.subr.mxu0 0.0
  %271 = vmatpush1.xpose.msra.mxu0 0.0
  %272 = vmatprep.subr.mxu0 0.0
  %273 = vmatpush1.xpose.msra.mxu0 0.0
  %274 = vmatprep.mubr.f32.mxu0 0.0
  %275 = vmatmul.mubr.f32.gmra.mrb[0].mxu0 %v206
  %v276 = vpop.f32.mrb[0].mxu0
  %v277 = vadd.f32 0.0, %v276
  %v278 = vpop.f32.mrb[0].mxu0
  %279 = vdwg.mxu0
  %vm280 = vcmask 64512
  %v281 = vsel %vm280, %v200, -inf
  %282 = vmax.xlane.f32.xlu0 %v281
  %v283 = vpop.xlane.xlu0 %282
  %v284 = vsel %vm280, %v277, -inf
  %285 = vmax.xlane.f32.xlu0 %v284
  %v286 = vpop.xlane.xlu0 %285
  %v287 = vsub.f32 %v200, %v283
  %v288 = vsub.f32 %v277, %v286
  %v289 = vmul.f32 %v287, 1.442695
  %v290 = vpow.pop %v289
  %v291 = vmul.f32 %v288, 1.442695
  %v292 = vpow.pop %v291
  %v293 = vsel %vm280, %v290, 0.0
  %294 = vadd.xlane.f32.xlu0 %v293
  %v295 = vpop.xlane.xlu0 %294
  %v296 = vsel %vm280, %v292, 0.0
  %297 = vadd.xlane.f32.xlu0 %v296
  %v298 = vpop.xlane.xlu0 %297
  %v299 = vrcp.pop %v295
  %v300 = vmul.f32 %v290, %v299
  %v301 = vrcp.pop %v298
  %v302 = vmul.f32 %v292, %v301
  %303 = vrot.lane.b32.xlu0 %v117, 64
  %v304 = vpop.permute.xlu0 %303
  %v307 = vsel %vm280, %v300, 0
  %309 = vmatprep.subr.mxu0 0.0
  %310 = vmatpush1.msra.mxu0 %v304
  %311 = vmatprep.subr.mxu0 0.0
  %312 = vmatpush1.msra.mxu0 0.0
  %313 = vmatprep.subr.mxu0 0.0
  %314 = vmatpush1.msra.mxu0 0.0
  %315 = vmatprep.subr.mxu0 0.0
  %316 = vmatpush1.msra.mxu0 0.0
  %317 = vmatprep.subr.mxu0 0.0
  %318 = vmatpush1.msra.mxu0 0.0
  %319 = vmatprep.subr.mxu0 0.0
  %320 = vmatpush1.msra.mxu0 0.0
  %321 = vmatprep.subr.mxu0 0.0
  %322 = vmatpush1.msra.mxu0 0.0
  %323 = vmatprep.subr.mxu0 0.0
  %324 = vmatpush1.msra.mxu0 0.0
  %325 = vmatprep.subr.mxu0 0.0
  %326 = vmatpush1.msra.mxu0 0.0
  %327 = vmatprep.subr.mxu0 0.0
  %328 = vmatpush1.msra.mxu0 0.0
  %329 = vmatprep.subr.mxu0 0.0
  %330 = vmatpush1.msra.mxu0 0.0
  %331 = vmatprep.subr.mxu0 0.0
  %332 = vmatpush1.msra.mxu0 0.0
  %333 = vmatprep.subr.mxu0 0.0
  %334 = vmatpush1.msra.mxu0 0.0
  %335 = vmatprep.subr.mxu0 0.0
  %336 = vmatpush1.msra.mxu0 0.0
  %337 = vmatprep.subr.mxu0 0.0
  %338 = vmatpush1.msra.mxu0 0.0
  %339 = vmatprep.subr.mxu0 0.0
  %340 = vmatpush1.msra.mxu0 0.0
  %341 = vmatprep.subr.mxu0 0.0
  %342 = vmatpush1.msra.mxu0 0.0
  %343 = vmatprep.subr.mxu0 0.0
  %344 = vmatpush1.msra.mxu0 0.0
  %345 = vmatprep.subr.mxu0 0.0
  %346 = vmatpush1.msra.mxu0 0.0
  %347 = vmatprep.subr.mxu0 0.0
  %348 = vmatpush1.msra.mxu0 0.0
  %349 = vmatprep.subr.mxu0 0.0
  %350 = vmatpush1.msra.mxu0 0.0
  %351 = vmatprep.subr.mxu0 0.0
  %352 = vmatpush1.msra.mxu0 0.0
  %353 = vmatprep.subr.mxu0 0.0
  %354 = vmatpush1.msra.mxu0 0.0
  %355 = vmatprep.subr.mxu0 0.0
  %356 = vmatpush1.msra.mxu0 0.0
  %357 = vmatprep.subr.mxu0 0.0
  %358 = vmatpush1.msra.mxu0 0.0
  %359 = vmatprep.subr.mxu0 0.0
  %360 = vmatpush1.msra.mxu0 0.0
  %361 = vmatprep.subr.mxu0 0.0
  %362 = vmatpush1.msra.mxu0 0.0
  %363 = vmatprep.subr.mxu0 0.0
  %364 = vmatpush1.msra.mxu0 0.0
  %365 = vmatprep.subr.mxu0 0.0
  %366 = vmatpush1.msra.mxu0 0.0
  %367 = vmatprep.subr.mxu0 0.0
  %368 = vmatpush1.msra.mxu0 0.0
  %369 = vmatprep.subr.mxu0 0.0
  %370 = vmatpush1.msra.mxu0 0.0
  %371 = vmatprep.subr.mxu0 0.0
  %372 = vmatpush1.msra.mxu0 0.0
  %373 = vmatprep.mubr.f32.mxu0 0.0
  %374 = vmatmul.mubr.f32.gmra.mrb[0].mxu0 %v307
  %v375 = vpop.f32.mrb[0].mxu0
  %v376 = vadd.f32 0.0, %v375
  %v377 = vpop.f32.mrb[0].mxu0
  %378 = vdwg.mxu0
  %379 = vrot.lane.b32.xlu0 %v122, 64
  %v380 = vpop.permute.xlu0 %379
  %v383 = vsel %vm280, %v302, 0
  %385 = vmatprep.subr.mxu0 0.0
  %386 = vmatpush1.msra.mxu0 %v380
  %387 = vmatprep.subr.mxu0 0.0
  %388 = vmatpush1.msra.mxu0 0.0
  %389 = vmatprep.subr.mxu0 0.0
  %390 = vmatpush1.msra.mxu0 0.0
  %391 = vmatprep.subr.mxu0 0.0
  %392 = vmatpush1.msra.mxu0 0.0
  %393 = vmatprep.subr.mxu0 0.0
  %394 = vmatpush1.msra.mxu0 0.0
  %395 = vmatprep.subr.mxu0 0.0
  %396 = vmatpush1.msra.mxu0 0.0
  %397 = vmatprep.subr.mxu0 0.0
  %398 = vmatpush1.msra.mxu0 0.0
  %399 = vmatprep.subr.mxu0 0.0
  %400 = vmatpush1.msra.mxu0 0.0
  %401 = vmatprep.subr.mxu0 0.0
  %402 = vmatpush1.msra.mxu0 0.0
  %403 = vmatprep.subr.mxu0 0.0
  %404 = vmatpush1.msra.mxu0 0.0
  %405 = vmatprep.subr.mxu0 0.0
  %406 = vmatpush1.msra.mxu0 0.0
  %407 = vmatprep.subr.mxu0 0.0
  %408 = vmatpush1.msra.mxu0 0.0
  %409 = vmatprep.subr.mxu0 0.0
  %410 = vmatpush1.msra.mxu0 0.0
  %411 = vmatprep.subr.mxu0 0.0
  %412 = vmatpush1.msra.mxu0 0.0
  %413 = vmatprep.subr.mxu0 0.0
  %414 = vmatpush1.msra.mxu0 0.0
  %415 = vmatprep.subr.mxu0 0.0
  %416 = vmatpush1.msra.mxu0 0.0
  %417 = vmatprep.subr.mxu0 0.0
  %418 = vmatpush1.msra.mxu0 0.0
  %419 = vmatprep.subr.mxu0 0.0
  %420 = vmatpush1.msra.mxu0 0.0
  %421 = vmatprep.subr.mxu0 0.0
  %422 = vmatpush1.msra.mxu0 0.0
  %423 = vmatprep.subr.mxu0 0.0
  %424 = vmatpush1.msra.mxu0 0.0
  %425 = vmatprep.subr.mxu0 0.0
  %426 = vmatpush1.msra.mxu0 0.0
  %427 = vmatprep.subr.mxu0 0.0
  %428 = vmatpush1.msra.mxu0 0.0
  %429 = vmatprep.subr.mxu0 0.0
  %430 = vmatpush1.msra.mxu0 0.0
  %431 = vmatprep.subr.mxu0 0.0
  %432 = vmatpush1.msra.mxu0 0.0
  %433 = vmatprep.subr.mxu0 0.0
  %434 = vmatpush1.msra.mxu0 0.0
  %435 = vmatprep.subr.mxu0 0.0
  %436 = vmatpush1.msra.mxu0 0.0
  %437 = vmatprep.subr.mxu0 0.0
  %438 = vmatpush1.msra.mxu0 0.0
  %439 = vmatprep.subr.mxu0 0.0
  %440 = vmatpush1.msra.mxu0 0.0
  %441 = vmatprep.subr.mxu0 0.0
  %442 = vmatpush1.msra.mxu0 0.0
  %443 = vmatprep.subr.mxu0 0.0
  %444 = vmatpush1.msra.mxu0 0.0
  %445 = vmatprep.subr.mxu0 0.0
  %446 = vmatpush1.msra.mxu0 0.0
  %447 = vmatprep.subr.mxu0 0.0
  %448 = vmatpush1.msra.mxu0 0.0
  %449 = vmatprep.mubr.f32.mxu0 0.0
  %450 = vmatmul.mubr.f32.gmra.mrb[0].mxu0 %v383
  %v451 = vpop.f32.mrb[0].mxu0
  %v452 = vadd.f32 0.0, %v451
  %v453 = vpop.f32.mrb[0].mxu0
  %454 = vdwg.mxu0
  %455 = vrot.lane.b32.xlu0 %v117, 112
  %v456 = vpop.permute.xlu0 %455
  %457 = vrot.lane.b32.xlu0 %v117, 80
  %v458 = vpop.permute.xlu0 %457
  %v459 = vsel %vm128, %v456, 0
  %v461 = vsel %vm128, %v458, 0
  %463 = vmatprep.subr.mxu0 0.0
  %464 = vmatpush1.xpose.msra.mxu0 %v461
  %465 = vmatprep.subr.mxu0 0.0
  %466 = vmatpush1.xpose.msra.mxu0 0.0
  %467 = vmatprep.subr.mxu0 0.0
  %468 = vmatpush1.xpose.msra.mxu0 0.0
  %469 = vmatprep.subr.mxu0 0.0
  %470 = vmatpush1.xpose.msra.mxu0 0.0
  %471 = vmatprep.subr.mxu0 0.0
  %472 = vmatpush1.xpose.msra.mxu0 0.0
  %473 = vmatprep.subr.mxu0 0.0
  %474 = vmatpush1.xpose.msra.mxu0 0.0
  %475 = vmatprep.subr.mxu0 0.0
  %476 = vmatpush1.xpose.msra.mxu0 0.0
  %477 = vmatprep.subr.mxu0 0.0
  %478 = vmatpush1.xpose.msra.mxu0 0.0
  %479 = vmatprep.subr.mxu0 0.0
  %480 = vmatpush1.xpose.msra.mxu0 0.0
  %481 = vmatprep.subr.mxu0 0.0
  %482 = vmatpush1.xpose.msra.mxu0 0.0
  %483 = vmatprep.subr.mxu0 0.0
  %484 = vmatpush1.xpose.msra.mxu0 0.0
  %485 = vmatprep.subr.mxu0 0.0
  %486 = vmatpush1.xpose.msra.mxu0 0.0
  %487 = vmatprep.subr.mxu0 0.0
  %488 = vmatpush1.xpose.msra.mxu0 0.0
  %489 = vmatprep.subr.mxu0 0.0
  %490 = vmatpush1.xpose.msra.mxu0 0.0
  %491 = vmatprep.subr.mxu0 0.0
  %492 = vmatpush1.xpose.msra.mxu0 0.0
  %493 = vmatprep.subr.mxu0 0.0
  %494 = vmatpush1.xpose.msra.mxu0 0.0
  %495 = vmatprep.subr.mxu0 0.0
  %496 = vmatpush1.xpose.msra.mxu0 0.0
  %497 = vmatprep.subr.mxu0 0.0
  %498 = vmatpush1.xpose.msra.mxu0 0.0
  %499 = vmatprep.subr.mxu0 0.0
  %500 = vmatpush1.xpose.msra.mxu0 0.0
  %501 = vmatprep.subr.mxu0 0.0
  %502 = vmatpush1.xpose.msra.mxu0 0.0
  %503 = vmatprep.subr.mxu0 0.0
  %504 = vmatpush1.xpose.msra.mxu0 0.0
  %505 = vmatprep.subr.mxu0 0.0
  %506 = vmatpush1.xpose.msra.mxu0 0.0
  %507 = vmatprep.subr.mxu0 0.0
  %508 = vmatpush1.xpose.msra.mxu0 0.0
  %509 = vmatprep.subr.mxu0 0.0
  %510 = vmatpush1.xpose.msra.mxu0 0.0
  %511 = vmatprep.subr.mxu0 0.0
  %512 = vmatpush1.xpose.msra.mxu0 0.0
  %513 = vmatprep.subr.mxu0 0.0
  %514 = vmatpush1.xpose.msra.mxu0 0.0
  %515 = vmatprep.subr.mxu0 0.0
  %516 = vmatpush1.xpose.msra.mxu0 0.0
  %517 = vmatprep.subr.mxu0 0.0
  %518 = vmatpush1.xpose.msra.mxu0 0.0
  %519 = vmatprep.subr.mxu0 0.0
  %520 = vmatpush1.xpose.msra.mxu0 0.0
  %521 = vmatprep.subr.mxu0 0.0
  %522 = vmatpush1.xpose.msra.mxu0 0.0
  %523 = vmatprep.subr.mxu0 0.0
  %524 = vmatpush1.xpose.msra.mxu0 0.0
  %525 = vmatprep.subr.mxu0 0.0
  %526 = vmatpush1.xpose.msra.mxu0 0.0
  %527 = vmatprep.mubr.f32.mxu0 0.0
  %528 = vmatmul.mubr.f32.gmra.mrb[0].mxu0 %v459
  %v529 = vpop.f32.mrb[0].mxu0
  %v530 = vadd.f32 0.0, %v529
  %v531 = vpop.f32.mrb[0].mxu0
  %532 = vdwg.mxu0
  %533 = vrot.lane.b32.xlu0 %v122, 112
  %v534 = vpop.permute.xlu0 %533
  %535 = vrot.lane.b32.xlu0 %v122, 80
  %v536 = vpop.permute.xlu0 %535
  %v537 = vsel %vm128, %v534, 0
  %v539 = vsel %vm128, %v536, 0
  %541 = vmatprep.subr.mxu0 0.0
  %542 = vmatpush1.xpose.msra.mxu0 %v539
  %543 = vmatprep.subr.mxu0 0.0
  %544 = vmatpush1.xpose.msra.mxu0 0.0
  %545 = vmatprep.subr.mxu0 0.0
  %546 = vmatpush1.xpose.msra.mxu0 0.0
  %547 = vmatprep.subr.mxu0 0.0
  %548 = vmatpush1.xpose.msra.mxu0 0.0
  %549 = vmatprep.subr.mxu0 0.0
  %550 = vmatpush1.xpose.msra.mxu0 0.0
  %551 = vmatprep.subr.mxu0 0.0
  %552 = vmatpush1.xpose.msra.mxu0 0.0
  %553 = vmatprep.subr.mxu0 0.0
  %554 = vmatpush1.xpose.msra.mxu0 0.0
  %555 = vmatprep.subr.mxu0 0.0
  %556 = vmatpush1.xpose.msra.mxu0 0.0
  %557 = vmatprep.subr.mxu0 0.0
  %558 = vmatpush1.xpose.msra.mxu0 0.0
  %559 = vmatprep.subr.mxu0 0.0
  %560 = vmatpush1.xpose.msra.mxu0 0.0
  %561 = vmatprep.subr.mxu0 0.0
  %562 = vmatpush1.xpose.msra.mxu0 0.0
  %563 = vmatprep.subr.mxu0 0.0
  %564 = vmatpush1.xpose.msra.mxu0 0.0
  %565 = vmatprep.subr.mxu0 0.0
  %566 = vmatpush1.xpose.msra.mxu0 0.0
  %567 = vmatprep.subr.mxu0 0.0
  %568 = vmatpush1.xpose.msra.mxu0 0.0
  %569 = vmatprep.subr.mxu0 0.0
  %570 = vmatpush1.xpose.msra.mxu0 0.0
  %571 = vmatprep.subr.mxu0 0.0
  %572 = vmatpush1.xpose.msra.mxu0 0.0
  %573 = vmatprep.subr.mxu0 0.0
  %574 = vmatpush1.xpose.msra.mxu0 0.0
  %575 = vmatprep.subr.mxu0 0.0
  %576 = vmatpush1.xpose.msra.mxu0 0.0
  %577 = vmatprep.subr.mxu0 0.0
  %578 = vmatpush1.xpose.msra.mxu0 0.0
  %579 = vmatprep.subr.mxu0 0.0
  %580 = vmatpush1.xpose.msra.mxu0 0.0
  %581 = vmatprep.subr.mxu0 0.0
  %582 = vmatpush1.xpose.msra.mxu0 0.0
  %583 = vmatprep.subr.mxu0 0.0
  %584 = vmatpush1.xpose.msra.mxu0 0.0
  %585 = vmatprep.subr.mxu0 0.0
  %586 = vmatpush1.xpose.msra.mxu0 0.0
  %587 = vmatprep.subr.mxu0 0.0
  %588 = vmatpush1.xpose.msra.mxu0 0.0
  %589 = vmatprep.subr.mxu0 0.0
  %590 = vmatpush1.xpose.msra.mxu0 0.0
  %591 = vmatprep.subr.mxu0 0.0
  %592 = vmatpush1.xpose.msra.mxu0 0.0
  %593 = vmatprep.subr.mxu0 0.0
  %594 = vmatpush1.xpose.msra.mxu0 0.0
  %595 = vmatprep.subr.mxu0 0.0
  %596 = vmatpush1.xpose.msra.mxu0 0.0
  %597 = vmatprep.subr.mxu0 0.0
  %598 = vmatpush1.xpose.msra.mxu0 0.0
  %599 = vmatprep.subr.mxu0 0.0
  %600 = vmatpush1.xpose.msra.mxu0 0.0
  %601 = vmatprep.subr.mxu0 0.0
  %602 = vmatpush1.xpose.msra.mxu0 0.0
  %603 = vmatprep.subr.mxu0 0.0
  %604 = vmatpush1.xpose.msra.mxu0 0.0
  %605 = vmatprep.mubr.f32.mxu0 0.0
  %606 = vmatmul.mubr.f32.gmra.mrb[0].mxu0 %v537
  %v607 = vpop.f32.mrb[0].mxu0
  %v608 = vadd.f32 0.0, %v607
  %v609 = vpop.f32.mrb[0].mxu0
  %610 = vdwg.mxu0
  %v611 = vsel %vm280, %v530, -inf
  %612 = vmax.xlane.f32.xlu0 %v611
  %v613 = vpop.xlane.xlu0 %612
  %v614 = vsel %vm280, %v608, -inf
  %615 = vmax.xlane.f32.xlu0 %v614
  %v616 = vpop.xlane.xlu0 %615
  %v617 = vsub.f32 %v530, %v613
  %v618 = vsub.f32 %v608, %v616
  %v619 = vmul.f32 %v617, 1.442695
  %v620 = vpow.pop %v619
  %v621 = vmul.f32 %v618, 1.442695
  %v622 = vpow.pop %v621
  %v623 = vsel %vm280, %v620, 0.0
  %624 = vadd.xlane.f32.xlu0 %v623
  %v625 = vpop.xlane.xlu0 %624
  %v626 = vsel %vm280, %v622, 0.0
  %627 = vadd.xlane.f32.xlu0 %v626
  %v628 = vpop.xlane.xlu0 %627
  %v629 = vrcp.pop %v625
  %v630 = vmul.f32 %v620, %v629
  %v631 = vrcp.pop %v628
  %v632 = vmul.f32 %v622, %v631
  %633 = vrot.lane.b32.xlu0 %v117, 48
  %v634 = vpop.permute.xlu0 %633
  %v637 = vsel %vm280, %v630, 0
  %639 = vmatprep.subr.mxu0 0.0
  %640 = vmatpush1.msra.mxu0 %v634
  %641 = vmatprep.subr.mxu0 0.0
  %642 = vmatpush1.msra.mxu0 0.0
  %643 = vmatprep.subr.mxu0 0.0
  %644 = vmatpush1.msra.mxu0 0.0
  %645 = vmatprep.subr.mxu0 0.0
  %646 = vmatpush1.msra.mxu0 0.0
  %647 = vmatprep.subr.mxu0 0.0
  %648 = vmatpush1.msra.mxu0 0.0
  %649 = vmatprep.subr.mxu0 0.0
  %650 = vmatpush1.msra.mxu0 0.0
  %651 = vmatprep.subr.mxu0 0.0
  %652 = vmatpush1.msra.mxu0 0.0
  %653 = vmatprep.subr.mxu0 0.0
  %654 = vmatpush1.msra.mxu0 0.0
  %655 = vmatprep.subr.mxu0 0.0
  %656 = vmatpush1.msra.mxu0 0.0
  %657 = vmatprep.subr.mxu0 0.0
  %658 = vmatpush1.msra.mxu0 0.0
  %659 = vmatprep.subr.mxu0 0.0
  %660 = vmatpush1.msra.mxu0 0.0
  %661 = vmatprep.subr.mxu0 0.0
  %662 = vmatpush1.msra.mxu0 0.0
  %663 = vmatprep.subr.mxu0 0.0
  %664 = vmatpush1.msra.mxu0 0.0
  %665 = vmatprep.subr.mxu0 0.0
  %666 = vmatpush1.msra.mxu0 0.0
  %667 = vmatprep.subr.mxu0 0.0
  %668 = vmatpush1.msra.mxu0 0.0
  %669 = vmatprep.subr.mxu0 0.0
  %670 = vmatpush1.msra.mxu0 0.0
  %671 = vmatprep.subr.mxu0 0.0
  %672 = vmatpush1.msra.mxu0 0.0
  %673 = vmatprep.subr.mxu0 0.0
  %674 = vmatpush1.msra.mxu0 0.0
  %675 = vmatprep.subr.mxu0 0.0
  %676 = vmatpush1.msra.mxu0 0.0
  %677 = vmatprep.subr.mxu0 0.0
  %678 = vmatpush1.msra.mxu0 0.0
  %679 = vmatprep.subr.mxu0 0.0
  %680 = vmatpush1.msra.mxu0 0.0
  %681 = vmatprep.subr.mxu0 0.0
  %682 = vmatpush1.msra.mxu0 0.0
  %683 = vmatprep.subr.mxu0 0.0
  %684 = vmatpush1.msra.mxu0 0.0
  %685 = vmatprep.subr.mxu0 0.0
  %686 = vmatpush1.msra.mxu0 0.0
  %687 = vmatprep.subr.mxu0 0.0
  %688 = vmatpush1.msra.mxu0 0.0
  %689 = vmatprep.subr.mxu0 0.0
  %690 = vmatpush1.msra.mxu0 0.0
  %691 = vmatprep.subr.mxu0 0.0
  %692 = vmatpush1.msra.mxu0 0.0
  %693 = vmatprep.subr.mxu0 0.0
  %694 = vmatpush1.msra.mxu0 0.0
  %695 = vmatprep.subr.mxu0 0.0
  %696 = vmatpush1.msra.mxu0 0.0
  %697 = vmatprep.subr.mxu0 0.0
  %698 = vmatpush1.msra.mxu0 0.0
  %699 = vmatprep.subr.mxu0 0.0
  %700 = vmatpush1.msra.mxu0 0.0
  %701 = vmatprep.subr.mxu0 0.0
  %702 = vmatpush1.msra.mxu0 0.0
  %703 = vmatprep.mubr.f32.mxu0 0.0
  %704 = vmatmul.mubr.f32.gmra.mrb[0].mxu0 %v637
  %v705 = vpop.f32.mrb[0].mxu0
  %v706 = vadd.f32 0.0, %v705
  %v707 = vpop.f32.mrb[0].mxu0
  %708 = vdwg.mxu0
  %709 = vrot.lane.b32.xlu0 %v122, 48
  %v710 = vpop.permute.xlu0 %709
  %v713 = vsel %vm280, %v632, 0
  %715 = vmatprep.subr.mxu0 0.0
  %716 = vmatpush1.msra.mxu0 %v710
  %717 = vmatprep.subr.mxu0 0.0
  %718 = vmatpush1.msra.mxu0 0.0
  %719 = vmatprep.subr.mxu0 0.0
  %720 = vmatpush1.msra.mxu0 0.0
  %721 = vmatprep.subr.mxu0 0.0
  %722 = vmatpush1.msra.mxu0 0.0
  %723 = vmatprep.subr.mxu0 0.0
  %724 = vmatpush1.msra.mxu0 0.0
  %725 = vmatprep.subr.mxu0 0.0
  %726 = vmatpush1.msra.mxu0 0.0
  %727 = vmatprep.subr.mxu0 0.0
  %728 = vmatpush1.msra.mxu0 0.0
  %729 = vmatprep.subr.mxu0 0.0
  %730 = vmatpush1.msra.mxu0 0.0
  %731 = vmatprep.subr.mxu0 0.0
  %732 = vmatpush1.msra.mxu0 0.0
  %733 = vmatprep.subr.mxu0 0.0
  %734 = vmatpush1.msra.mxu0 0.0
  %735 = vmatprep.subr.mxu0 0.0
  %736 = vmatpush1.msra.mxu0 0.0
  %737 = vmatprep.subr.mxu0 0.0
  %738 = vmatpush1.msra.mxu0 0.0
  %739 = vmatprep.subr.mxu0 0.0
  %740 = vmatpush1.msra.mxu0 0.0
  %741 = vmatprep.subr.mxu0 0.0
  %742 = vmatpush1.msra.mxu0 0.0
  %743 = vmatprep.subr.mxu0 0.0
  %744 = vmatpush1.msra.mxu0 0.0
  %745 = vmatprep.subr.mxu0 0.0
  %746 = vmatpush1.msra.mxu0 0.0
  %747 = vmatprep.subr.mxu0 0.0
  %748 = vmatpush1.msra.mxu0 0.0
  %749 = vmatprep.subr.mxu0 0.0
  %750 = vmatpush1.msra.mxu0 0.0
  %751 = vmatprep.subr.mxu0 0.0
  %752 = vmatpush1.msra.mxu0 0.0
  %753 = vmatprep.subr.mxu0 0.0
  %754 = vmatpush1.msra.mxu0 0.0
  %755 = vmatprep.subr.mxu0 0.0
  %756 = vmatpush1.msra.mxu0 0.0
  %757 = vmatprep.subr.mxu0 0.0
  %758 = vmatpush1.msra.mxu0 0.0
  %759 = vmatprep.subr.mxu0 0.0
  %760 = vmatpush1.msra.mxu0 0.0
  %761 = vmatprep.subr.mxu0 0.0
  %762 = vmatpush1.msra.mxu0 0.0
  %763 = vmatprep.subr.mxu0 0.0
  %764 = vmatpush1.msra.mxu0 0.0
  %765 = vmatprep.subr.mxu0 0.0
  %766 = vmatpush1.msra.mxu0 0.0
  %767 = vmatprep.subr.mxu0 0.0
  %768 = vmatpush1.msra.mxu0 0.0
  %769 = vmatprep.subr.mxu0 0.0
  %770 = vmatpush1.msra.mxu0 0.0
  %771 = vmatprep.subr.mxu0 0.0
  %772 = vmatpush1.msra.mxu0 0.0
  %773 = vmatprep.subr.mxu0 0.0
  %774 = vmatpush1.msra.mxu0 0.0
  %775 = vmatprep.subr.mxu0 0.0
  %776 = vmatpush1.msra.mxu0 0.0
  %777 = vmatprep.subr.mxu0 0.0
  %778 = vmatpush1.msra.mxu0 0.0
  %779 = vmatprep.mubr.f32.mxu0 0.0
  %780 = vmatmul.mubr.f32.gmra.mrb[0].mxu0 %v713
  %v781 = vpop.f32.mrb[0].mxu0
  %v782 = vadd.f32 0.0, %v781
  %v783 = vpop.f32.mrb[0].mxu0
  %784 = vdwg.mxu0
  %787 = vrot.lane.b32.xlu0 %v706, 16
  %v788 = vpop.permute.xlu0 %787
  %789 = vrot.lane.b32.xlu0 %v782, 16
  %v790 = vpop.permute.xlu0 %789
  %v793 = vsel %vm128, %v376, %v788
  %v794 = vsel %vm128, %v452, %v790
  %v795 = vld [vmem:[%s2] sm:$0xff]
  %v796 = vld [vmem:[%s2 + $0x8] sm:$0xff]
  %v797 = vld [vmem:[%s2 + $0x10] sm:$0xff]
  %v798 = vld [vmem:[%s2 + $0x18] sm:$0xff]
  %v799 = vlaneseq
  %v800 = vshrl.u32 %v799, 7
  %v801 = vsub.s32 0, %v800
  %v802 = vrot.slane %v31, %v801
  %v804 = vsel %vm43, %v793, 0
  %v807 = vsel %vm43, %v794, 0
  %809 = vmatprep.subr.mxu0 0.0
  %810 = vmatpush1.msra.mxu0 %v795
  %811 = vmatprep.subr.mxu0 0.0
  %812 = vmatpush1.msra.mxu0 %v796
  %813 = vmatprep.subr.mxu0 0.0
  %814 = vmatpush1.msra.mxu0 %v797
  %815 = vmatprep.subr.mxu0 0.0
  %816 = vmatpush1.msra.mxu0 %v798
  %817 = vmatprep.subr.mxu0 0.0
  %818 = vmatpush1.msra.mxu0 0.0
  %819 = vmatprep.subr.mxu0 0.0
  %820 = vmatpush1.msra.mxu0 0.0
  %821 = vmatprep.subr.mxu0 0.0
  %822 = vmatpush1.msra.mxu0 0.0
  %823 = vmatprep.subr.mxu0 0.0
  %824 = vmatpush1.msra.mxu0 0.0
  %825 = vmatprep.subr.mxu0 0.0
  %826 = vmatpush1.msra.mxu0 0.0
  %827 = vmatprep.subr.mxu0 0.0
  %828 = vmatpush1.msra.mxu0 0.0
  %829 = vmatprep.subr.mxu0 0.0
  %830 = vmatpush1.msra.mxu0 0.0
  %831 = vmatprep.subr.mxu0 0.0
  %832 = vmatpush1.msra.mxu0 0.0
  %833 = vmatprep.subr.mxu0 0.0
  %834 = vmatpush1.msra.mxu0 0.0
  %835 = vmatprep.subr.mxu0 0.0
  %836 = vmatpush1.msra.mxu0 0.0
  %837 = vmatprep.subr.mxu0 0.0
  %838 = vmatpush1.msra.mxu0 0.0
  %839 = vmatprep.subr.mxu0 0.0
  %840 = vmatpush1.msra.mxu0 0.0
  %841 = vmatprep.subr.mxu0 0.0
  %842 = vmatpush1.msra.mxu0 0.0
  %843 = vmatprep.subr.mxu0 0.0
  %844 = vmatpush1.msra.mxu0 0.0
  %845 = vmatprep.subr.mxu0 0.0
  %846 = vmatpush1.msra.mxu0 0.0
  %847 = vmatprep.subr.mxu0 0.0
  %848 = vmatpush1.msra.mxu0 0.0
  %849 = vmatprep.subr.mxu0 0.0
  %850 = vmatpush1.msra.mxu0 0.0
  %851 = vmatprep.subr.mxu0 0.0
  %852 = vmatpush1.msra.mxu0 0.0
  %853 = vmatprep.subr.mxu0 0.0
  %854 = vmatpush1.msra.mxu0 0.0
  %855 = vmatprep.subr.mxu0 0.0
  %856 = vmatpush1.msra.mxu0 0.0
  %857 = vmatprep.subr.mxu0 0.0
  %858 = vmatpush1.msra.mxu0 0.0
  %859 = vmatprep.subr.mxu0 0.0
  %860 = vmatpush1.msra.mxu0 0.0
  %861 = vmatprep.subr.mxu0 0.0
  %862 = vmatpush1.msra.mxu0 0.0
  %863 = vmatprep.subr.mxu0 0.0
  %864 = vmatpush1.msra.mxu0 0.0
  %865 = vmatprep.subr.mxu0 0.0
  %866 = vmatpush1.msra.mxu0 0.0
  %867 = vmatprep.subr.mxu0 0.0
  %868 = vmatpush1.msra.mxu0 0.0
  %869 = vmatprep.subr.mxu0 0.0
  %870 = vmatpush1.msra.mxu0 0.0
  %871 = vmatprep.subr.mxu0 0.0
  %872 = vmatpush1.msra.mxu0 0.0
  %873 = vmatprep.mubr.f32.mxu0 0.0
  %874 = vmatmul.mubr.f32.gmra.mrb[0].mxu0 %v804
  %v875 = vpop.f32.mrb[0].mxu0
  %v876 = vadd.f32 %v802, %v875
  %v877 = vpop.f32.mrb[0].mxu0
  %878 = vmatprep.mubr.f32.mxu0 0.0
  %879 = vmatmul.mubr.f32.gmra.mrb[0].mxu0 %v807
  %v880 = vpop.f32.mrb[0].mxu0
  %v881 = vadd.f32 %v802, %v880
  %v882 = vpop.f32.mrb[0].mxu0
  %883 = vdwg.mxu0
  %v884 = vadd.f32 %v29, %v876
  %v885 = vadd.f32 %v30, %v881
  %v886 = vsel %vm43, %v884, 0.0
  %887 = vadd.xlane.f32.xlu0 %v886
  %v888 = vpop.xlane.xlu0 %887
  %v889 = vsel %vm43, %v885, 0.0
  %890 = vadd.xlane.f32.xlu0 %v889
  %v891 = vpop.xlane.xlu0 %890
  %v892 = vrcp.pop 32.0
  %v893 = vmul.f32 %v888, %v892
  %v894 = vmul.f32 %v891, %v892
  %v895 = vsub.f32 %v884, %v893
  %v896 = vsub.f32 %v885, %v894
  %v897 = vmul.f32 %v895, %v895
  %v898 = vmul.f32 %v896, %v896
  %v899 = vsel %vm43, %v897, 0.0
  %900 = vadd.xlane.f32.xlu0 %v899
  %v901 = vpop.xlane.xlu0 %900
  %v902 = vsel %vm43, %v898, 0.0
  %903 = vadd.xlane.f32.xlu0 %v902
  %v904 = vpop.xlane.xlu0 %903
  %v905 = vmul.f32 %v901, %v892
  %v906 = vmul.f32 %v904, %v892
  %v907 = vadd.f32 %v905, 1e-05
  %v908 = vadd.f32 %v906, 1e-05
  %v909 = vrsqrt.pop %v907
  %v910 = vrsqrt.pop %v908
  %v911 = vmul.f32 %v895, %v909
  %v912 = vmul.f32 %v896, %v910
  %v913 = vlaneseq
  %v914 = vshrl.u32 %v913, 7
  %v915 = vsub.s32 1, %v914
  %v916 = vrot.slane %v31, %v915
  %v917 = vmul.f32 %v911, %v916
  %v918 = vmul.f32 %v912, %v916
  %v919 = vlaneseq
  %v920 = vshrl.u32 %v919, 7
  %v921 = vsub.s32 2, %v920
  %v922 = vrot.slane %v31, %v921
  %v923 = vadd.f32 %v917, %v922
  %v924 = vadd.f32 %v918, %v922
  %v925 = vld [vmem:[%s3] sm:$0xff]
  %v926 = vld [vmem:[%s3 + $0x8] sm:$0xff]
  %v927 = vld [vmem:[%s3 + $0x10] sm:$0xff]
  %v928 = vld [vmem:[%s3 + $0x18] sm:$0xff]
  %v929 = vld [vmem:[%s6] sm:$0x1]
  %v931 = vlaneseq
  %v932 = vshrl.u32 %v931, 7
  %v933 = vsub.s32 0, %v932
  %v934 = vrot.slane %v929, %v933
  %v937 = vsel %vm43, %v923, 0
  %v940 = vsel %vm43, %v924, 0
  %942 = vmatprep.subr.mxu0 0.0
  %943 = vmatpush1.msra.mxu0 %v925
  %944 = vmatprep.subr.mxu0 0.0
  %945 = vmatpush1.msra.mxu0 %v926
  %946 = vmatprep.subr.mxu0 0.0
  %947 = vmatpush1.msra.mxu0 %v927
  %948 = vmatprep.subr.mxu0 0.0
  %949 = vmatpush1.msra.mxu0 %v928
  %950 = vmatprep.subr.mxu0 0.0
  %951 = vmatpush1.msra.mxu0 0.0
  %952 = vmatprep.subr.mxu0 0.0
  %953 = vmatpush1.msra.mxu0 0.0
  %954 = vmatprep.subr.mxu0 0.0
  %955 = vmatpush1.msra.mxu0 0.0
  %956 = vmatprep.subr.mxu0 0.0
  %957 = vmatpush1.msra.mxu0 0.0
  %958 = vmatprep.subr.mxu0 0.0
  %959 = vmatpush1.msra.mxu0 0.0
  %960 = vmatprep.subr.mxu0 0.0
  %961 = vmatpush1.msra.mxu0 0.0
  %962 = vmatprep.subr.mxu0 0.0
  %963 = vmatpush1.msra.mxu0 0.0
  %964 = vmatprep.subr.mxu0 0.0
  %965 = vmatpush1.msra.mxu0 0.0
  %966 = vmatprep.subr.mxu0 0.0
  %967 = vmatpush1.msra.mxu0 0.0
  %968 = vmatprep.subr.mxu0 0.0
  %969 = vmatpush1.msra.mxu0 0.0
  %970 = vmatprep.subr.mxu0 0.0
  %971 = vmatpush1.msra.mxu0 0.0
  %972 = vmatprep.subr.mxu0 0.0
  %973 = vmatpush1.msra.mxu0 0.0
  %974 = vmatprep.subr.mxu0 0.0
  %975 = vmatpush1.msra.mxu0 0.0
  %976 = vmatprep.subr.mxu0 0.0
  %977 = vmatpush1.msra.mxu0 0.0
  %978 = vmatprep.subr.mxu0 0.0
  %979 = vmatpush1.msra.mxu0 0.0
  %980 = vmatprep.subr.mxu0 0.0
  %981 = vmatpush1.msra.mxu0 0.0
  %982 = vmatprep.subr.mxu0 0.0
  %983 = vmatpush1.msra.mxu0 0.0
  %984 = vmatprep.subr.mxu0 0.0
  %985 = vmatpush1.msra.mxu0 0.0
  %986 = vmatprep.subr.mxu0 0.0
  %987 = vmatpush1.msra.mxu0 0.0
  %988 = vmatprep.subr.mxu0 0.0
  %989 = vmatpush1.msra.mxu0 0.0
  %990 = vmatprep.subr.mxu0 0.0
  %991 = vmatpush1.msra.mxu0 0.0
  %992 = vmatprep.subr.mxu0 0.0
  %993 = vmatpush1.msra.mxu0 0.0
  %994 = vmatprep.subr.mxu0 0.0
  %995 = vmatpush1.msra.mxu0 0.0
  %996 = vmatprep.subr.mxu0 0.0
  %997 = vmatpush1.msra.mxu0 0.0
  %998 = vmatprep.subr.mxu0 0.0
  %999 = vmatpush1.msra.mxu0 0.0
  %1000 = vmatprep.subr.mxu0 0.0
  %1001 = vmatpush1.msra.mxu0 0.0
  %1002 = vmatprep.subr.mxu0 0.0
  %1003 = vmatpush1.msra.mxu0 0.0
  %1004 = vmatprep.subr.mxu0 0.0
  %1005 = vmatpush1.msra.mxu0 0.0
  %1006 = vmatprep.mubr.f32.mxu0 0.0
  %1007 = vmatmul.mubr.f32.gmra.mrb[0].mxu0 %v937
  %v1008 = vpop.f32.mrb[0].mxu0
  %v1009 = vadd.f32 %v934, %v1008
  %v1010 = vpop.f32.mrb[0].mxu0
  %1011 = vmatprep.mubr.f32.mxu0 0.0
  %1012 = vmatmul.mubr.f32.gmra.mrb[0].mxu0 %v940
  %v1013 = vpop.f32.mrb[0].mxu0
  %v1014 = vadd.f32 %v934, %v1013
  %v1015 = vpop.f32.mrb[0].mxu0
  %1016 = vdwg.mxu0
  %v1017 = vmax.f32 %v1009, 0.0
  %v1018 = vmax.f32 %v1014, 0.0
  %v1019 = vld [vmem:[%s4] sm:$0xff]
  %v1020 = vld [vmem:[%s4 + $0x8] sm:$0xff]
  %v1021 = vld [vmem:[%s4 + $0x10] sm:$0xff]
  %v1022 = vld [vmem:[%s4 + $0x18] sm:$0xff]
  %v1023 = vld [vmem:[%s4 + $0x20] sm:$0xff]
  %v1024 = vld [vmem:[%s4 + $0x28] sm:$0xff]
  %v1025 = vld [vmem:[%s4 + $0x30] sm:$0xff]
  %v1026 = vld [vmem:[%s4 + $0x38] sm:$0xff]
  %v1027 = vlaneseq
  %v1028 = vshrl.u32 %v1027, 7
  %v1029 = vsub.s32 3, %v1028
  %v1030 = vrot.slane %v31, %v1029
  %vm1031 = vcmask 523264
  %v1033 = vsel %vm1031, %v1017, 0
  %v1036 = vsel %vm1031, %v1018, 0
  %1038 = vmatprep.subr.mxu0 0.0
  %1039 = vmatpush1.msra.mxu0 %v1019
  %1040 = vmatprep.subr.mxu0 0.0
  %1041 = vmatpush1.msra.mxu0 %v1020
  %1042 = vmatprep.subr.mxu0 0.0
  %1043 = vmatpush1.msra.mxu0 %v1021
  %1044 = vmatprep.subr.mxu0 0.0
  %1045 = vmatpush1.msra.mxu0 %v1022
  %1046 = vmatprep.subr.mxu0 0.0
  %1047 = vmatpush1.msra.mxu0 %v1023
  %1048 = vmatprep.subr.mxu0 0.0
  %1049 = vmatpush1.msra.mxu0 %v1024
  %1050 = vmatprep.subr.mxu0 0.0
  %1051 = vmatpush1.msra.mxu0 %v1025
  %1052 = vmatprep.subr.mxu0 0.0
  %1053 = vmatpush1.msra.mxu0 %v1026
  %1054 = vmatprep.subr.mxu0 0.0
  %1055 = vmatpush1.msra.mxu0 0.0
  %1056 = vmatprep.subr.mxu0 0.0
  %1057 = vmatpush1.msra.mxu0 0.0
  %1058 = vmatprep.subr.mxu0 0.0
  %1059 = vmatpush1.msra.mxu0 0.0
  %1060 = vmatprep.subr.mxu0 0.0
  %1061 = vmatpush1.msra.mxu0 0.0
  %1062 = vmatprep.subr.mxu0 0.0
  %1063 = vmatpush1.msra.mxu0 0.0
  %1064 = vmatprep.subr.mxu0 0.0
  %1065 = vmatpush1.msra.mxu0 0.0
  %1066 = vmatprep.subr.mxu0 0.0
  %1067 = vmatpush1.msra.mxu0 0.0
  %1068 = vmatprep.subr.mxu0 0.0
  %1069 = vmatpush1.msra.mxu0 0.0
  %1070 = vmatprep.subr.mxu0 0.0
  %1071 = vmatpush1.msra.mxu0 0.0
  %1072 = vmatprep.subr.mxu0 0.0
  %1073 = vmatpush1.msra.mxu0 0.0
  %1074 = vmatprep.subr.mxu0 0.0
  %1075 = vmatpush1.msra.mxu0 0.0
  %1076 = vmatprep.subr.mxu0 0.0
  %1077 = vmatpush1.msra.mxu0 0.0
  %1078 = vmatprep.subr.mxu0 0.0
  %1079 = vmatpush1.msra.mxu0 0.0
  %1080 = vmatprep.subr.mxu0 0.0
  %1081 = vmatpush1.msra.mxu0 0.0
  %1082 = vmatprep.subr.mxu0 0.0
  %1083 = vmatpush1.msra.mxu0 0.0
  %1084 = vmatprep.subr.mxu0 0.0
  %1085 = vmatpush1.msra.mxu0 0.0
  %1086 = vmatprep.subr.mxu0 0.0
  %1087 = vmatpush1.msra.mxu0 0.0
  %1088 = vmatprep.subr.mxu0 0.0
  %1089 = vmatpush1.msra.mxu0 0.0
  %1090 = vmatprep.subr.mxu0 0.0
  %1091 = vmatpush1.msra.mxu0 0.0
  %1092 = vmatprep.subr.mxu0 0.0
  %1093 = vmatpush1.msra.mxu0 0.0
  %1094 = vmatprep.subr.mxu0 0.0
  %1095 = vmatpush1.msra.mxu0 0.0
  %1096 = vmatprep.subr.mxu0 0.0
  %1097 = vmatpush1.msra.mxu0 0.0
  %1098 = vmatprep.subr.mxu0 0.0
  %1099 = vmatpush1.msra.mxu0 0.0
  %1100 = vmatprep.subr.mxu0 0.0
  %1101 = vmatpush1.msra.mxu0 0.0
  %1102 = vmatprep.mubr.f32.mxu0 0.0
  %1103 = vmatmul.mubr.f32.gmra.mrb[0].mxu0 %v1033
  %v1104 = vpop.f32.mrb[0].mxu0
  %v1105 = vadd.f32 %v1030, %v1104
  %v1106 = vpop.f32.mrb[0].mxu0
  %1107 = vmatprep.mubr.f32.mxu0 0.0
  %1108 = vmatmul.mubr.f32.gmra.mrb[0].mxu0 %v1036
  %v1109 = vpop.f32.mrb[0].mxu0
  %v1110 = vadd.f32 %v1030, %v1109
  %v1111 = vpop.f32.mrb[0].mxu0
  %1112 = vdwg.mxu0
  %v1113 = vadd.f32 %v923, %v1105
  %v1114 = vadd.f32 %v924, %v1110
  %v1115 = vsel %vm43, %v1113, 0.0
  %1116 = vadd.xlane.f32.xlu0 %v1115
  %v1117 = vpop.xlane.xlu0 %1116
  %v1118 = vsel %vm43, %v1114, 0.0
  %1119 = vadd.xlane.f32.xlu0 %v1118
  %v1120 = vpop.xlane.xlu0 %1119
  %v1121 = vmul.f32 %v1117, %v892
  %v1122 = vmul.f32 %v1120, %v892
  %v1123 = vsub.f32 %v1113, %v1121
  %v1124 = vsub.f32 %v1114, %v1122
  %v1125 = vmul.f32 %v1123, %v1123
  %v1126 = vmul.f32 %v1124, %v1124
  %v1127 = vsel %vm43, %v1125, 0.0
  %1128 = vadd.xlane.f32.xlu0 %v1127
  %v1129 = vpop.xlane.xlu0 %1128
  %v1130 = vsel %vm43, %v1126, 0.0
  %1131 = vadd.xlane.f32.xlu0 %v1130
  %v1132 = vpop.xlane.xlu0 %1131
  %v1133 = vmul.f32 %v1129, %v892
  %v1134 = vmul.f32 %v1132, %v892
  %v1135 = vadd.f32 %v1133, 1e-05
  %v1136 = vadd.f32 %v1134, 1e-05
  %v1137 = vrsqrt.pop %v1135
  %v1138 = vrsqrt.pop %v1136
  %v1139 = vmul.f32 %v1123, %v1137
  %v1140 = vmul.f32 %v1124, %v1138
  %v1141 = vlaneseq
  %v1142 = vshrl.u32 %v1141, 7
  %v1143 = vsub.s32 4, %v1142
  %v1144 = vrot.slane %v31, %v1143
  %v1145 = vmul.f32 %v1139, %v1144
  %v1146 = vmul.f32 %v1140, %v1144
  %v1147 = vlaneseq
  %v1148 = vshrl.u32 %v1147, 7
  %v1149 = vsub.s32 5, %v1148
  %v1150 = vrot.slane %v31, %v1149
  %v1151 = vadd.f32 %v1145, %v1150
  %v1152 = vadd.f32 %v1146, %v1150
  %s1153 = scalar_lea.vmem %s7, 8
  %v1154 = vld [vmem:[%s1153] sm:$0x3f]
  %s1155 = scalar_lea.vmem %s1, 32
  %v1156 = vld [vmem:[%s1155] sm:$0xff]
  %v1157 = vld [vmem:[%s1155 + $0x8] sm:$0xff]
  %v1158 = vld [vmem:[%s1155 + $0x10] sm:$0xff]
  %v1159 = vld [vmem:[%s1155 + $0x18] sm:$0xff]
  %s1160 = scalar_lea.vmem %s5, 1
  %v1161 = vld [vmem:[%s1160] sm:$0x1]
  %v1163 = vlaneseq
  %v1164 = vshrl.u32 %v1163, 7
  %v1165 = vsub.s32 0, %v1164
  %v1166 = vrot.slane %v1161, %v1165
  %v1169 = vsel %vm43, %v1151, 0
  %v1172 = vsel %vm43, %v1152, 0
  %1174 = vmatprep.subr.mxu0 0.0
  %1175 = vmatpush1.msra.mxu0 %v1156
  %1176 = vmatprep.subr.mxu0 0.0
  %1177 = vmatpush1.msra.mxu0 %v1157
  %1178 = vmatprep.subr.mxu0 0.0
  %1179 = vmatpush1.msra.mxu0 %v1158
  %1180 = vmatprep.subr.mxu0 0.0
  %1181 = vmatpush1.msra.mxu0 %v1159
  %1182 = vmatprep.subr.mxu0 0.0
  %1183 = vmatpush1.msra.mxu0 0.0
  %1184 = vmatprep.subr.mxu0 0.0
  %1185 = vmatpush1.msra.mxu0 0.0
  %1186 = vmatprep.subr.mxu0 0.0
  %1187 = vmatpush1.msra.mxu0 0.0
  %1188 = vmatprep.subr.mxu0 0.0
  %1189 = vmatpush1.msra.mxu0 0.0
  %1190 = vmatprep.subr.mxu0 0.0
  %1191 = vmatpush1.msra.mxu0 0.0
  %1192 = vmatprep.subr.mxu0 0.0
  %1193 = vmatpush1.msra.mxu0 0.0
  %1194 = vmatprep.subr.mxu0 0.0
  %1195 = vmatpush1.msra.mxu0 0.0
  %1196 = vmatprep.subr.mxu0 0.0
  %1197 = vmatpush1.msra.mxu0 0.0
  %1198 = vmatprep.subr.mxu0 0.0
  %1199 = vmatpush1.msra.mxu0 0.0
  %1200 = vmatprep.subr.mxu0 0.0
  %1201 = vmatpush1.msra.mxu0 0.0
  %1202 = vmatprep.subr.mxu0 0.0
  %1203 = vmatpush1.msra.mxu0 0.0
  %1204 = vmatprep.subr.mxu0 0.0
  %1205 = vmatpush1.msra.mxu0 0.0
  %1206 = vmatprep.subr.mxu0 0.0
  %1207 = vmatpush1.msra.mxu0 0.0
  %1208 = vmatprep.subr.mxu0 0.0
  %1209 = vmatpush1.msra.mxu0 0.0
  %1210 = vmatprep.subr.mxu0 0.0
  %1211 = vmatpush1.msra.mxu0 0.0
  %1212 = vmatprep.subr.mxu0 0.0
  %1213 = vmatpush1.msra.mxu0 0.0
  %1214 = vmatprep.subr.mxu0 0.0
  %1215 = vmatpush1.msra.mxu0 0.0
  %1216 = vmatprep.subr.mxu0 0.0
  %1217 = vmatpush1.msra.mxu0 0.0
  %1218 = vmatprep.subr.mxu0 0.0
  %1219 = vmatpush1.msra.mxu0 0.0
  %1220 = vmatprep.subr.mxu0 0.0
  %1221 = vmatpush1.msra.mxu0 0.0
  %1222 = vmatprep.subr.mxu0 0.0
  %1223 = vmatpush1.msra.mxu0 0.0
  %1224 = vmatprep.subr.mxu0 0.0
  %1225 = vmatpush1.msra.mxu0 0.0
  %1226 = vmatprep.subr.mxu0 0.0
  %1227 = vmatpush1.msra.mxu0 0.0
  %1228 = vmatprep.subr.mxu0 0.0
  %1229 = vmatpush1.msra.mxu0 0.0
  %1230 = vmatprep.subr.mxu0 0.0
  %1231 = vmatpush1.msra.mxu0 0.0
  %1232 = vmatprep.subr.mxu0 0.0
  %1233 = vmatpush1.msra.mxu0 0.0
  %1234 = vmatprep.subr.mxu0 0.0
  %1235 = vmatpush1.msra.mxu0 0.0
  %1236 = vmatprep.subr.mxu0 0.0
  %1237 = vmatpush1.msra.mxu0 0.0
  %1238 = vmatprep.mubr.f32.mxu0 0.0
  %1239 = vmatmul.mubr.f32.gmra.mrb[0].mxu0 %v1169
  %v1240 = vpop.f32.mrb[0].mxu0
  %v1241 = vadd.f32 %v1166, %v1240
  %v1242 = vpop.f32.mrb[0].mxu0
  %1243 = vmatprep.mubr.f32.mxu0 0.0
  %1244 = vmatmul.mubr.f32.gmra.mrb[0].mxu0 %v1172
  %v1245 = vpop.f32.mrb[0].mxu0
  %v1246 = vadd.f32 %v1166, %v1245
  %v1247 = vpop.f32.mrb[0].mxu0
  %1248 = vdwg.mxu0
  %1250 = vrot.lane.b32.xlu0 %v1241, 96
  %v1251 = vpop.permute.xlu0 %1250
  %v1252 = vsel %vm128, %v1241, 0
  %v1254 = vsel %vm128, %v1251, 0
  %1256 = vmatprep.subr.mxu0 0.0
  %1257 = vmatpush1.xpose.msra.mxu0 %v1254
  %1258 = vmatprep.subr.mxu0 0.0
  %1259 = vmatpush1.xpose.msra.mxu0 0.0
  %1260 = vmatprep.subr.mxu0 0.0
  %1261 = vmatpush1.xpose.msra.mxu0 0.0
  %1262 = vmatprep.subr.mxu0 0.0
  %1263 = vmatpush1.xpose.msra.mxu0 0.0
  %1264 = vmatprep.subr.mxu0 0.0
  %1265 = vmatpush1.xpose.msra.mxu0 0.0
  %1266 = vmatprep.subr.mxu0 0.0
  %1267 = vmatpush1.xpose.msra.mxu0 0.0
  %1268 = vmatprep.subr.mxu0 0.0
  %1269 = vmatpush1.xpose.msra.mxu0 0.0
  %1270 = vmatprep.subr.mxu0 0.0
  %1271 = vmatpush1.xpose.msra.mxu0 0.0
  %1272 = vmatprep.subr.mxu0 0.0
  %1273 = vmatpush1.xpose.msra.mxu0 0.0
  %1274 = vmatprep.subr.mxu0 0.0
  %1275 = vmatpush1.xpose.msra.mxu0 0.0
  %1276 = vmatprep.subr.mxu0 0.0
  %1277 = vmatpush1.xpose.msra.mxu0 0.0
  %1278 = vmatprep.subr.mxu0 0.0
  %1279 = vmatpush1.xpose.msra.mxu0 0.0
  %1280 = vmatprep.subr.mxu0 0.0
  %1281 = vmatpush1.xpose.msra.mxu0 0.0
  %1282 = vmatprep.subr.mxu0 0.0
  %1283 = vmatpush1.xpose.msra.mxu0 0.0
  %1284 = vmatprep.subr.mxu0 0.0
  %1285 = vmatpush1.xpose.msra.mxu0 0.0
  %1286 = vmatprep.subr.mxu0 0.0
  %1287 = vmatpush1.xpose.msra.mxu0 0.0
  %1288 = vmatprep.subr.mxu0 0.0
  %1289 = vmatpush1.xpose.msra.mxu0 0.0
  %1290 = vmatprep.subr.mxu0 0.0
  %1291 = vmatpush1.xpose.msra.mxu0 0.0
  %1292 = vmatprep.subr.mxu0 0.0
  %1293 = vmatpush1.xpose.msra.mxu0 0.0
  %1294 = vmatprep.subr.mxu0 0.0
  %1295 = vmatpush1.xpose.msra.mxu0 0.0
  %1296 = vmatprep.subr.mxu0 0.0
  %1297 = vmatpush1.xpose.msra.mxu0 0.0
  %1298 = vmatprep.subr.mxu0 0.0
  %1299 = vmatpush1.xpose.msra.mxu0 0.0
  %1300 = vmatprep.subr.mxu0 0.0
  %1301 = vmatpush1.xpose.msra.mxu0 0.0
  %1302 = vmatprep.subr.mxu0 0.0
  %1303 = vmatpush1.xpose.msra.mxu0 0.0
  %1304 = vmatprep.subr.mxu0 0.0
  %1305 = vmatpush1.xpose.msra.mxu0 0.0
  %1306 = vmatprep.subr.mxu0 0.0
  %1307 = vmatpush1.xpose.msra.mxu0 0.0
  %1308 = vmatprep.subr.mxu0 0.0
  %1309 = vmatpush1.xpose.msra.mxu0 0.0
  %1310 = vmatprep.subr.mxu0 0.0
  %1311 = vmatpush1.xpose.msra.mxu0 0.0
  %1312 = vmatprep.subr.mxu0 0.0
  %1313 = vmatpush1.xpose.msra.mxu0 0.0
  %1314 = vmatprep.subr.mxu0 0.0
  %1315 = vmatpush1.xpose.msra.mxu0 0.0
  %1316 = vmatprep.subr.mxu0 0.0
  %1317 = vmatpush1.xpose.msra.mxu0 0.0
  %1318 = vmatprep.subr.mxu0 0.0
  %1319 = vmatpush1.xpose.msra.mxu0 0.0
  %1320 = vmatprep.mubr.f32.mxu0 0.0
  %1321 = vmatmul.mubr.f32.gmra.mrb[0].mxu0 %v1252
  %v1322 = vpop.f32.mrb[0].mxu0
  %v1323 = vadd.f32 0.0, %v1322
  %v1324 = vpop.f32.mrb[0].mxu0
  %1325 = vdwg.mxu0
  %1327 = vrot.lane.b32.xlu0 %v1246, 96
  %v1328 = vpop.permute.xlu0 %1327
  %v1329 = vsel %vm128, %v1246, 0
  %v1331 = vsel %vm128, %v1328, 0
  %1333 = vmatprep.subr.mxu0 0.0
  %1334 = vmatpush1.xpose.msra.mxu0 %v1331
  %1335 = vmatprep.subr.mxu0 0.0
  %1336 = vmatpush1.xpose.msra.mxu0 0.0
  %1337 = vmatprep.subr.mxu0 0.0
  %1338 = vmatpush1.xpose.msra.mxu0 0.0
  %1339 = vmatprep.subr.mxu0 0.0
  %1340 = vmatpush1.xpose.msra.mxu0 0.0
  %1341 = vmatprep.subr.mxu0 0.0
  %1342 = vmatpush1.xpose.msra.mxu0 0.0
  %1343 = vmatprep.subr.mxu0 0.0
  %1344 = vmatpush1.xpose.msra.mxu0 0.0
  %1345 = vmatprep.subr.mxu0 0.0
  %1346 = vmatpush1.xpose.msra.mxu0 0.0
  %1347 = vmatprep.subr.mxu0 0.0
  %1348 = vmatpush1.xpose.msra.mxu0 0.0
  %1349 = vmatprep.subr.mxu0 0.0
  %1350 = vmatpush1.xpose.msra.mxu0 0.0
  %1351 = vmatprep.subr.mxu0 0.0
  %1352 = vmatpush1.xpose.msra.mxu0 0.0
  %1353 = vmatprep.subr.mxu0 0.0
  %1354 = vmatpush1.xpose.msra.mxu0 0.0
  %1355 = vmatprep.subr.mxu0 0.0
  %1356 = vmatpush1.xpose.msra.mxu0 0.0
  %1357 = vmatprep.subr.mxu0 0.0
  %1358 = vmatpush1.xpose.msra.mxu0 0.0
  %1359 = vmatprep.subr.mxu0 0.0
  %1360 = vmatpush1.xpose.msra.mxu0 0.0
  %1361 = vmatprep.subr.mxu0 0.0
  %1362 = vmatpush1.xpose.msra.mxu0 0.0
  %1363 = vmatprep.subr.mxu0 0.0
  %1364 = vmatpush1.xpose.msra.mxu0 0.0
  %1365 = vmatprep.subr.mxu0 0.0
  %1366 = vmatpush1.xpose.msra.mxu0 0.0
  %1367 = vmatprep.subr.mxu0 0.0
  %1368 = vmatpush1.xpose.msra.mxu0 0.0
  %1369 = vmatprep.subr.mxu0 0.0
  %1370 = vmatpush1.xpose.msra.mxu0 0.0
  %1371 = vmatprep.subr.mxu0 0.0
  %1372 = vmatpush1.xpose.msra.mxu0 0.0
  %1373 = vmatprep.subr.mxu0 0.0
  %1374 = vmatpush1.xpose.msra.mxu0 0.0
  %1375 = vmatprep.subr.mxu0 0.0
  %1376 = vmatpush1.xpose.msra.mxu0 0.0
  %1377 = vmatprep.subr.mxu0 0.0
  %1378 = vmatpush1.xpose.msra.mxu0 0.0
  %1379 = vmatprep.subr.mxu0 0.0
  %1380 = vmatpush1.xpose.msra.mxu0 0.0
  %1381 = vmatprep.subr.mxu0 0.0
  %1382 = vmatpush1.xpose.msra.mxu0 0.0
  %1383 = vmatprep.subr.mxu0 0.0
  %1384 = vmatpush1.xpose.msra.mxu0 0.0
  %1385 = vmatprep.subr.mxu0 0.0
  %1386 = vmatpush1.xpose.msra.mxu0 0.0
  %1387 = vmatprep.subr.mxu0 0.0
  %1388 = vmatpush1.xpose.msra.mxu0 0.0
  %1389 = vmatprep.subr.mxu0 0.0
  %1390 = vmatpush1.xpose.msra.mxu0 0.0
  %1391 = vmatprep.subr.mxu0 0.0
  %1392 = vmatpush1.xpose.msra.mxu0 0.0
  %1393 = vmatprep.subr.mxu0 0.0
  %1394 = vmatpush1.xpose.msra.mxu0 0.0
  %1395 = vmatprep.subr.mxu0 0.0
  %1396 = vmatpush1.xpose.msra.mxu0 0.0
  %1397 = vmatprep.mubr.f32.mxu0 0.0
  %1398 = vmatmul.mubr.f32.gmra.mrb[0].mxu0 %v1329
  %v1399 = vpop.f32.mrb[0].mxu0
  %v1400 = vadd.f32 0.0, %v1399
  %v1401 = vpop.f32.mrb[0].mxu0
  %1402 = vdwg.mxu0
  %v1403 = vsel %vm280, %v1323, -inf
  %1404 = vmax.xlane.f32.xlu0 %v1403
  %v1405 = vpop.xlane.xlu0 %1404
  %v1406 = vsel %vm280, %v1400, -inf
  %1407 = vmax.xlane.f32.xlu0 %v1406
  %v1408 = vpop.xlane.xlu0 %1407
  %v1409 = vsub.f32 %v1323, %v1405
  %v1410 = vsub.f32 %v1400, %v1408
  %v1411 = vmul.f32 %v1409, 1.442695
  %v1412 = vpow.pop %v1411
  %v1413 = vmul.f32 %v1410, 1.442695
  %v1414 = vpow.pop %v1413
  %v1415 = vsel %vm280, %v1412, 0.0
  %1416 = vadd.xlane.f32.xlu0 %v1415
  %v1417 = vpop.xlane.xlu0 %1416
  %v1418 = vsel %vm280, %v1414, 0.0
  %1419 = vadd.xlane.f32.xlu0 %v1418
  %v1420 = vpop.xlane.xlu0 %1419
  %v1421 = vrcp.pop %v1417
  %v1422 = vmul.f32 %v1412, %v1421
  %v1423 = vrcp.pop %v1420
  %v1424 = vmul.f32 %v1414, %v1423
  %1425 = vrot.lane.b32.xlu0 %v1241, 64
  %v1426 = vpop.permute.xlu0 %1425
  %v1429 = vsel %vm280, %v1422, 0
  %1431 = vmatprep.subr.mxu0 0.0
  %1432 = vmatpush1.msra.mxu0 %v1426
  %1433 = vmatprep.subr.mxu0 0.0
  %1434 = vmatpush1.msra.mxu0 0.0
  %1435 = vmatprep.subr.mxu0 0.0
  %1436 = vmatpush1.msra.mxu0 0.0
  %1437 = vmatprep.subr.mxu0 0.0
  %1438 = vmatpush1.msra.mxu0 0.0
  %1439 = vmatprep.subr.mxu0 0.0
  %1440 = vmatpush1.msra.mxu0 0.0
  %1441 = vmatprep.subr.mxu0 0.0
  %1442 = vmatpush1.msra.mxu0 0.0
  %1443 = vmatprep.subr.mxu0 0.0
  %1444 = vmatpush1.msra.mxu0 0.0
  %1445 = vmatprep.subr.mxu0 0.0
  %1446 = vmatpush1.msra.mxu0 0.0
  %1447 = vmatprep.subr.mxu0 0.0
  %1448 = vmatpush1.msra.mxu0 0.0
  %1449 = vmatprep.subr.mxu0 0.0
  %1450 = vmatpush1.msra.mxu0 0.0
  %1451 = vmatprep.subr.mxu0 0.0
  %1452 = vmatpush1.msra.mxu0 0.0
  %1453 = vmatprep.subr.mxu0 0.0
  %1454 = vmatpush1.msra.mxu0 0.0
  %1455 = vmatprep.subr.mxu0 0.0
  %1456 = vmatpush1.msra.mxu0 0.0
  %1457 = vmatprep.subr.mxu0 0.0
  %1458 = vmatpush1.msra.mxu0 0.0
  %1459 = vmatprep.subr.mxu0 0.0
  %1460 = vmatpush1.msra.mxu0 0.0
  %1461 = vmatprep.subr.mxu0 0.0
  %1462 = vmatpush1.msra.mxu0 0.0
  %1463 = vmatprep.subr.mxu0 0.0
  %1464 = vmatpush1.msra.mxu0 0.0
  %1465 = vmatprep.subr.mxu0 0.0
  %1466 = vmatpush1.msra.mxu0 0.0
  %1467 = vmatprep.subr.mxu0 0.0
  %1468 = vmatpush1.msra.mxu0 0.0
  %1469 = vmatprep.subr.mxu0 0.0
  %1470 = vmatpush1.msra.mxu0 0.0
  %1471 = vmatprep.subr.mxu0 0.0
  %1472 = vmatpush1.msra.mxu0 0.0
  %1473 = vmatprep.subr.mxu0 0.0
  %1474 = vmatpush1.msra.mxu0 0.0
  %1475 = vmatprep.subr.mxu0 0.0
  %1476 = vmatpush1.msra.mxu0 0.0
  %1477 = vmatprep.subr.mxu0 0.0
  %1478 = vmatpush1.msra.mxu0 0.0
  %1479 = vmatprep.subr.mxu0 0.0
  %1480 = vmatpush1.msra.mxu0 0.0
  %1481 = vmatprep.subr.mxu0 0.0
  %1482 = vmatpush1.msra.mxu0 0.0
  %1483 = vmatprep.subr.mxu0 0.0
  %1484 = vmatpush1.msra.mxu0 0.0
  %1485 = vmatprep.subr.mxu0 0.0
  %1486 = vmatpush1.msra.mxu0 0.0
  %1487 = vmatprep.subr.mxu0 0.0
  %1488 = vmatpush1.msra.mxu0 0.0
  %1489 = vmatprep.subr.mxu0 0.0
  %1490 = vmatpush1.msra.mxu0 0.0
  %1491 = vmatprep.subr.mxu0 0.0
  %1492 = vmatpush1.msra.mxu0 0.0
  %1493 = vmatprep.subr.mxu0 0.0
  %1494 = vmatpush1.msra.mxu0 0.0
  %1495 = vmatprep.mubr.f32.mxu0 0.0
  %1496 = vmatmul.mubr.f32.gmra.mrb[0].mxu0 %v1429
  %v1497 = vpop.f32.mrb[0].mxu0
  %v1498 = vadd.f32 0.0, %v1497
  %v1499 = vpop.f32.mrb[0].mxu0
  %1500 = vdwg.mxu0
  %1501 = vrot.lane.b32.xlu0 %v1246, 64
  %v1502 = vpop.permute.xlu0 %1501
  %v1505 = vsel %vm280, %v1424, 0
  %1507 = vmatprep.subr.mxu0 0.0
  %1508 = vmatpush1.msra.mxu0 %v1502
  %1509 = vmatprep.subr.mxu0 0.0
  %1510 = vmatpush1.msra.mxu0 0.0
  %1511 = vmatprep.subr.mxu0 0.0
  %1512 = vmatpush1.msra.mxu0 0.0
  %1513 = vmatprep.subr.mxu0 0.0
  %1514 = vmatpush1.msra.mxu0 0.0
  %1515 = vmatprep.subr.mxu0 0.0
  %1516 = vmatpush1.msra.mxu0 0.0
  %1517 = vmatprep.subr.mxu0 0.0
  %1518 = vmatpush1.msra.mxu0 0.0
  %1519 = vmatprep.subr.mxu0 0.0
  %1520 = vmatpush1.msra.mxu0 0.0
  %1521 = vmatprep.subr.mxu0 0.0
  %1522 = vmatpush1.msra.mxu0 0.0
  %1523 = vmatprep.subr.mxu0 0.0
  %1524 = vmatpush1.msra.mxu0 0.0
  %1525 = vmatprep.subr.mxu0 0.0
  %1526 = vmatpush1.msra.mxu0 0.0
  %1527 = vmatprep.subr.mxu0 0.0
  %1528 = vmatpush1.msra.mxu0 0.0
  %1529 = vmatprep.subr.mxu0 0.0
  %1530 = vmatpush1.msra.mxu0 0.0
  %1531 = vmatprep.subr.mxu0 0.0
  %1532 = vmatpush1.msra.mxu0 0.0
  %1533 = vmatprep.subr.mxu0 0.0
  %1534 = vmatpush1.msra.mxu0 0.0
  %1535 = vmatprep.subr.mxu0 0.0
  %1536 = vmatpush1.msra.mxu0 0.0
  %1537 = vmatprep.subr.mxu0 0.0
  %1538 = vmatpush1.msra.mxu0 0.0
  %1539 = vmatprep.subr.mxu0 0.0
  %1540 = vmatpush1.msra.mxu0 0.0
  %1541 = vmatprep.subr.mxu0 0.0
  %1542 = vmatpush1.msra.mxu0 0.0
  %1543 = vmatprep.subr.mxu0 0.0
  %1544 = vmatpush1.msra.mxu0 0.0
  %1545 = vmatprep.subr.mxu0 0.0
  %1546 = vmatpush1.msra.mxu0 0.0
  %1547 = vmatprep.subr.mxu0 0.0
  %1548 = vmatpush1.msra.mxu0 0.0
  %1549 = vmatprep.subr.mxu0 0.0
  %1550 = vmatpush1.msra.mxu0 0.0
  %1551 = vmatprep.subr.mxu0 0.0
  %1552 = vmatpush1.msra.mxu0 0.0
  %1553 = vmatprep.subr.mxu0 0.0
  %1554 = vmatpush1.msra.mxu0 0.0
  %1555 = vmatprep.subr.mxu0 0.0
  %1556 = vmatpush1.msra.mxu0 0.0
  %1557 = vmatprep.subr.mxu0 0.0
  %1558 = vmatpush1.msra.mxu0 0.0
  %1559 = vmatprep.subr.mxu0 0.0
  %1560 = vmatpush1.msra.mxu0 0.0
  %1561 = vmatprep.subr.mxu0 0.0
  %1562 = vmatpush1.msra.mxu0 0.0
  %1563 = vmatprep.subr.mxu0 0.0
  %1564 = vmatpush1.msra.mxu0 0.0
  %1565 = vmatprep.subr.mxu0 0.0
  %1566 = vmatpush1.msra.mxu0 0.0
  %1567 = vmatprep.subr.mxu0 0.0
  %1568 = vmatpush1.msra.mxu0 0.0
  %1569 = vmatprep.subr.mxu0 0.0
  %1570 = vmatpush1.msra.mxu0 0.0
  %1571 = vmatprep.mubr.f32.mxu0 0.0
  %1572 = vmatmul.mubr.f32.gmra.mrb[0].mxu0 %v1505
  %v1573 = vpop.f32.mrb[0].mxu0
  %v1574 = vadd.f32 0.0, %v1573
  %v1575 = vpop.f32.mrb[0].mxu0
  %1576 = vdwg.mxu0
  %1577 = vrot.lane.b32.xlu0 %v1241, 112
  %v1578 = vpop.permute.xlu0 %1577
  %1579 = vrot.lane.b32.xlu0 %v1241, 80
  %v1580 = vpop.permute.xlu0 %1579
  %v1581 = vsel %vm128, %v1578, 0
  %v1583 = vsel %vm128, %v1580, 0
  %1585 = vmatprep.subr.mxu0 0.0
  %1586 = vmatpush1.xpose.msra.mxu0 %v1583
  %1587 = vmatprep.subr.mxu0 0.0
  %1588 = vmatpush1.xpose.msra.mxu0 0.0
  %1589 = vmatprep.subr.mxu0 0.0
  %1590 = vmatpush1.xpose.msra.mxu0 0.0
  %1591 = vmatprep.subr.mxu0 0.0
  %1592 = vmatpush1.xpose.msra.mxu0 0.0
  %1593 = vmatprep.subr.mxu0 0.0
  %1594 = vmatpush1.xpose.msra.mxu0 0.0
  %1595 = vmatprep.subr.mxu0 0.0
  %1596 = vmatpush1.xpose.msra.mxu0 0.0
  %1597 = vmatprep.subr.mxu0 0.0
  %1598 = vmatpush1.xpose.msra.mxu0 0.0
  %1599 = vmatprep.subr.mxu0 0.0
  %1600 = vmatpush1.xpose.msra.mxu0 0.0
  %1601 = vmatprep.subr.mxu0 0.0
  %1602 = vmatpush1.xpose.msra.mxu0 0.0
  %1603 = vmatprep.subr.mxu0 0.0
  %1604 = vmatpush1.xpose.msra.mxu0 0.0
  %1605 = vmatprep.subr.mxu0 0.0
  %1606 = vmatpush1.xpose.msra.mxu0 0.0
  %1607 = vmatprep.subr.mxu0 0.0
  %1608 = vmatpush1.xpose.msra.mxu0 0.0
  %1609 = vmatprep.subr.mxu0 0.0
  %1610 = vmatpush1.xpose.msra.mxu0 0.0
  %1611 = vmatprep.subr.mxu0 0.0
  %1612 = vmatpush1.xpose.msra.mxu0 0.0
  %1613 = vmatprep.subr.mxu0 0.0
  %1614 = vmatpush1.xpose.msra.mxu0 0.0
  %1615 = vmatprep.subr.mxu0 0.0
  %1616 = vmatpush1.xpose.msra.mxu0 0.0
  %1617 = vmatprep.subr.mxu0 0.0
  %1618 = vmatpush1.xpose.msra.mxu0 0.0
  %1619 = vmatprep.subr.mxu0 0.0
  %1620 = vmatpush1.xpose.msra.mxu0 0.0
  %1621 = vmatprep.subr.mxu0 0.0
  %1622 = vmatpush1.xpose.msra.mxu0 0.0
  %1623 = vmatprep.subr.mxu0 0.0
  %1624 = vmatpush1.xpose.msra.mxu0 0.0
  %1625 = vmatprep.subr.mxu0 0.0
  %1626 = vmatpush1.xpose.msra.mxu0 0.0
  %1627 = vmatprep.subr.mxu0 0.0
  %1628 = vmatpush1.xpose.msra.mxu0 0.0
  %1629 = vmatprep.subr.mxu0 0.0
  %1630 = vmatpush1.xpose.msra.mxu0 0.0
  %1631 = vmatprep.subr.mxu0 0.0
  %1632 = vmatpush1.xpose.msra.mxu0 0.0
  %1633 = vmatprep.subr.mxu0 0.0
  %1634 = vmatpush1.xpose.msra.mxu0 0.0
  %1635 = vmatprep.subr.mxu0 0.0
  %1636 = vmatpush1.xpose.msra.mxu0 0.0
  %1637 = vmatprep.subr.mxu0 0.0
  %1638 = vmatpush1.xpose.msra.mxu0 0.0
  %1639 = vmatprep.subr.mxu0 0.0
  %1640 = vmatpush1.xpose.msra.mxu0 0.0
  %1641 = vmatprep.subr.mxu0 0.0
  %1642 = vmatpush1.xpose.msra.mxu0 0.0
  %1643 = vmatprep.subr.mxu0 0.0
  %1644 = vmatpush1.xpose.msra.mxu0 0.0
  %1645 = vmatprep.subr.mxu0 0.0
  %1646 = vmatpush1.xpose.msra.mxu0 0.0
  %1647 = vmatprep.subr.mxu0 0.0
  %1648 = vmatpush1.xpose.msra.mxu0 0.0
  %1649 = vmatprep.mubr.f32.mxu0 0.0
  %1650 = vmatmul.mubr.f32.gmra.mrb[0].mxu0 %v1581
  %v1651 = vpop.f32.mrb[0].mxu0
  %v1652 = vadd.f32 0.0, %v1651
  %v1653 = vpop.f32.mrb[0].mxu0
  %1654 = vdwg.mxu0
  %1655 = vrot.lane.b32.xlu0 %v1246, 112
  %v1656 = vpop.permute.xlu0 %1655
  %1657 = vrot.lane.b32.xlu0 %v1246, 80
  %v1658 = vpop.permute.xlu0 %1657
  %v1659 = vsel %vm128, %v1656, 0
  %v1661 = vsel %vm128, %v1658, 0
  %1663 = vmatprep.subr.mxu0 0.0
  %1664 = vmatpush1.xpose.msra.mxu0 %v1661
  %1665 = vmatprep.subr.mxu0 0.0
  %1666 = vmatpush1.xpose.msra.mxu0 0.0
  %1667 = vmatprep.subr.mxu0 0.0
  %1668 = vmatpush1.xpose.msra.mxu0 0.0
  %1669 = vmatprep.subr.mxu0 0.0
  %1670 = vmatpush1.xpose.msra.mxu0 0.0
  %1671 = vmatprep.subr.mxu0 0.0
  %1672 = vmatpush1.xpose.msra.mxu0 0.0
  %1673 = vmatprep.subr.mxu0 0.0
  %1674 = vmatpush1.xpose.msra.mxu0 0.0
  %1675 = vmatprep.subr.mxu0 0.0
  %1676 = vmatpush1.xpose.msra.mxu0 0.0
  %1677 = vmatprep.subr.mxu0 0.0
  %1678 = vmatpush1.xpose.msra.mxu0 0.0
  %1679 = vmatprep.subr.mxu0 0.0
  %1680 = vmatpush1.xpose.msra.mxu0 0.0
  %1681 = vmatprep.subr.mxu0 0.0
  %1682 = vmatpush1.xpose.msra.mxu0 0.0
  %1683 = vmatprep.subr.mxu0 0.0
  %1684 = vmatpush1.xpose.msra.mxu0 0.0
  %1685 = vmatprep.subr.mxu0 0.0
  %1686 = vmatpush1.xpose.msra.mxu0 0.0
  %1687 = vmatprep.subr.mxu0 0.0
  %1688 = vmatpush1.xpose.msra.mxu0 0.0
  %1689 = vmatprep.subr.mxu0 0.0
  %1690 = vmatpush1.xpose.msra.mxu0 0.0
  %1691 = vmatprep.subr.mxu0 0.0
  %1692 = vmatpush1.xpose.msra.mxu0 0.0
  %1693 = vmatprep.subr.mxu0 0.0
  %1694 = vmatpush1.xpose.msra.mxu0 0.0
  %1695 = vmatprep.subr.mxu0 0.0
  %1696 = vmatpush1.xpose.msra.mxu0 0.0
  %1697 = vmatprep.subr.mxu0 0.0
  %1698 = vmatpush1.xpose.msra.mxu0 0.0
  %1699 = vmatprep.subr.mxu0 0.0
  %1700 = vmatpush1.xpose.msra.mxu0 0.0
  %1701 = vmatprep.subr.mxu0 0.0
  %1702 = vmatpush1.xpose.msra.mxu0 0.0
  %1703 = vmatprep.subr.mxu0 0.0
  %1704 = vmatpush1.xpose.msra.mxu0 0.0
  %1705 = vmatprep.subr.mxu0 0.0
  %1706 = vmatpush1.xpose.msra.mxu0 0.0
  %1707 = vmatprep.subr.mxu0 0.0
  %1708 = vmatpush1.xpose.msra.mxu0 0.0
  %1709 = vmatprep.subr.mxu0 0.0
  %1710 = vmatpush1.xpose.msra.mxu0 0.0
  %1711 = vmatprep.subr.mxu0 0.0
  %1712 = vmatpush1.xpose.msra.mxu0 0.0
  %1713 = vmatprep.subr.mxu0 0.0
  %1714 = vmatpush1.xpose.msra.mxu0 0.0
  %1715 = vmatprep.subr.mxu0 0.0
  %1716 = vmatpush1.xpose.msra.mxu0 0.0
  %1717 = vmatprep.subr.mxu0 0.0
  %1718 = vmatpush1.xpose.msra.mxu0 0.0
  %1719 = vmatprep.subr.mxu0 0.0
  %1720 = vmatpush1.xpose.msra.mxu0 0.0
  %1721 = vmatprep.subr.mxu0 0.0
  %1722 = vmatpush1.xpose.msra.mxu0 0.0
  %1723 = vmatprep.subr.mxu0 0.0
  %1724 = vmatpush1.xpose.msra.mxu0 0.0
  %1725 = vmatprep.subr.mxu0 0.0
  %1726 = vmatpush1.xpose.msra.mxu0 0.0
  %1727 = vmatprep.mubr.f32.mxu0 0.0
  %1728 = vmatmul.mubr.f32.gmra.mrb[0].mxu0 %v1659
  %v1729 = vpop.f32.mrb[0].mxu0
  %v1730 = vadd.f32 0.0, %v1729
  %v1731 = vpop.f32.mrb[0].mxu0
  %1732 = vdwg.mxu0
  %v1733 = vsel %vm280, %v1652, -inf
  %1734 = vmax.xlane.f32.xlu0 %v1733
  %v1735 = vpop.xlane.xlu0 %1734
  %v1736 = vsel %vm280, %v1730, -inf
  %1737 = vmax.xlane.f32.xlu0 %v1736
  %v1738 = vpop.xlane.xlu0 %1737
  %v1739 = vsub.f32 %v1652, %v1735
  %v1740 = vsub.f32 %v1730, %v1738
  %v1741 = vmul.f32 %v1739, 1.442695
  %v1742 = vpow.pop %v1741
  %v1743 = vmul.f32 %v1740, 1.442695
  %v1744 = vpow.pop %v1743
  %v1745 = vsel %vm280, %v1742, 0.0
  %1746 = vadd.xlane.f32.xlu0 %v1745
  %v1747 = vpop.xlane.xlu0 %1746
  %v1748 = vsel %vm280, %v1744, 0.0
  %1749 = vadd.xlane.f32.xlu0 %v1748
  %v1750 = vpop.xlane.xlu0 %1749
  %v1751 = vrcp.pop %v1747
  %v1752 = vmul.f32 %v1742, %v1751
  %v1753 = vrcp.pop %v1750
  %v1754 = vmul.f32 %v1744, %v1753
  %1755 = vrot.lane.b32.xlu0 %v1241, 48
  %v1756 = vpop.permute.xlu0 %1755
  %v1759 = vsel %vm280, %v1752, 0
  %1761 = vmatprep.subr.mxu0 0.0
  %1762 = vmatpush1.msra.mxu0 %v1756
  %1763 = vmatprep.subr.mxu0 0.0
  %1764 = vmatpush1.msra.mxu0 0.0
  %1765 = vmatprep.subr.mxu0 0.0
  %1766 = vmatpush1.msra.mxu0 0.0
  %1767 = vmatprep.subr.mxu0 0.0
  %1768 = vmatpush1.msra.mxu0 0.0
  %1769 = vmatprep.subr.mxu0 0.0
  %1770 = vmatpush1.msra.mxu0 0.0
  %1771 = vmatprep.subr.mxu0 0.0
  %1772 = vmatpush1.msra.mxu0 0.0
  %1773 = vmatprep.subr.mxu0 0.0
  %1774 = vmatpush1.msra.mxu0 0.0
  %1775 = vmatprep.subr.mxu0 0.0
  %1776 = vmatpush1.msra.mxu0 0.0
  %1777 = vmatprep.subr.mxu0 0.0
  %1778 = vmatpush1.msra.mxu0 0.0
  %1779 = vmatprep.subr.mxu0 0.0
  %1780 = vmatpush1.msra.mxu0 0.0
  %1781 = vmatprep.subr.mxu0 0.0
  %1782 = vmatpush1.msra.mxu0 0.0
  %1783 = vmatprep.subr.mxu0 0.0
  %1784 = vmatpush1.msra.mxu0 0.0
  %1785 = vmatprep.subr.mxu0 0.0
  %1786 = vmatpush1.msra.mxu0 0.0
  %1787 = vmatprep.subr.mxu0 0.0
  %1788 = vmatpush1.msra.mxu0 0.0
  %1789 = vmatprep.subr.mxu0 0.0
  %1790 = vmatpush1.msra.mxu0 0.0
  %1791 = vmatprep.subr.mxu0 0.0
  %1792 = vmatpush1.msra.mxu0 0.0
  %1793 = vmatprep.subr.mxu0 0.0
  %1794 = vmatpush1.msra.mxu0 0.0
  %1795 = vmatprep.subr.mxu0 0.0
  %1796 = vmatpush1.msra.mxu0 0.0
  %1797 = vmatprep.subr.mxu0 0.0
  %1798 = vmatpush1.msra.mxu0 0.0
  %1799 = vmatprep.subr.mxu0 0.0
  %1800 = vmatpush1.msra.mxu0 0.0
  %1801 = vmatprep.subr.mxu0 0.0
  %1802 = vmatpush1.msra.mxu0 0.0
  %1803 = vmatprep.subr.mxu0 0.0
  %1804 = vmatpush1.msra.mxu0 0.0
  %1805 = vmatprep.subr.mxu0 0.0
  %1806 = vmatpush1.msra.mxu0 0.0
  %1807 = vmatprep.subr.mxu0 0.0
  %1808 = vmatpush1.msra.mxu0 0.0
  %1809 = vmatprep.subr.mxu0 0.0
  %1810 = vmatpush1.msra.mxu0 0.0
  %1811 = vmatprep.subr.mxu0 0.0
  %1812 = vmatpush1.msra.mxu0 0.0
  %1813 = vmatprep.subr.mxu0 0.0
  %1814 = vmatpush1.msra.mxu0 0.0
  %1815 = vmatprep.subr.mxu0 0.0
  %1816 = vmatpush1.msra.mxu0 0.0
  %1817 = vmatprep.subr.mxu0 0.0
  %1818 = vmatpush1.msra.mxu0 0.0
  %1819 = vmatprep.subr.mxu0 0.0
  %1820 = vmatpush1.msra.mxu0 0.0
  %1821 = vmatprep.subr.mxu0 0.0
  %1822 = vmatpush1.msra.mxu0 0.0
  %1823 = vmatprep.subr.mxu0 0.0
  %1824 = vmatpush1.msra.mxu0 0.0
  %1825 = vmatprep.mubr.f32.mxu0 0.0
  %1826 = vmatmul.mubr.f32.gmra.mrb[0].mxu0 %v1759
  %v1827 = vpop.f32.mrb[0].mxu0
  %v1828 = vadd.f32 0.0, %v1827
  %v1829 = vpop.f32.mrb[0].mxu0
  %1830 = vdwg.mxu0
  %1831 = vrot.lane.b32.xlu0 %v1246, 48
  %v1832 = vpop.permute.xlu0 %1831
  %v1835 = vsel %vm280, %v1754, 0
  %1837 = vmatprep.subr.mxu0 0.0
  %1838 = vmatpush1.msra.mxu0 %v1832
  %1839 = vmatprep.subr.mxu0 0.0
  %1840 = vmatpush1.msra.mxu0 0.0
  %1841 = vmatprep.subr.mxu0 0.0
  %1842 = vmatpush1.msra.mxu0 0.0
  %1843 = vmatprep.subr.mxu0 0.0
  %1844 = vmatpush1.msra.mxu0 0.0
  %1845 = vmatprep.subr.mxu0 0.0
  %1846 = vmatpush1.msra.mxu0 0.0
  %1847 = vmatprep.subr.mxu0 0.0
  %1848 = vmatpush1.msra.mxu0 0.0
  %1849 = vmatprep.subr.mxu0 0.0
  %1850 = vmatpush1.msra.mxu0 0.0
  %1851 = vmatprep.subr.mxu0 0.0
  %1852 = vmatpush1.msra.mxu0 0.0
  %1853 = vmatprep.subr.mxu0 0.0
  %1854 = vmatpush1.msra.mxu0 0.0
  %1855 = vmatprep.subr.mxu0 0.0
  %1856 = vmatpush1.msra.mxu0 0.0
  %1857 = vmatprep.subr.mxu0 0.0
  %1858 = vmatpush1.msra.mxu0 0.0
  %1859 = vmatprep.subr.mxu0 0.0
  %1860 = vmatpush1.msra.mxu0 0.0
  %1861 = vmatprep.subr.mxu0 0.0
  %1862 = vmatpush1.msra.mxu0 0.0
  %1863 = vmatprep.subr.mxu0 0.0
  %1864 = vmatpush1.msra.mxu0 0.0
  %1865 = vmatprep.subr.mxu0 0.0
  %1866 = vmatpush1.msra.mxu0 0.0
  %1867 = vmatprep.subr.mxu0 0.0
  %1868 = vmatpush1.msra.mxu0 0.0
  %1869 = vmatprep.subr.mxu0 0.0
  %1870 = vmatpush1.msra.mxu0 0.0
  %1871 = vmatprep.subr.mxu0 0.0
  %1872 = vmatpush1.msra.mxu0 0.0
  %1873 = vmatprep.subr.mxu0 0.0
  %1874 = vmatpush1.msra.mxu0 0.0
  %1875 = vmatprep.subr.mxu0 0.0
  %1876 = vmatpush1.msra.mxu0 0.0
  %1877 = vmatprep.subr.mxu0 0.0
  %1878 = vmatpush1.msra.mxu0 0.0
  %1879 = vmatprep.subr.mxu0 0.0
  %1880 = vmatpush1.msra.mxu0 0.0
  %1881 = vmatprep.subr.mxu0 0.0
  %1882 = vmatpush1.msra.mxu0 0.0
  %1883 = vmatprep.subr.mxu0 0.0
  %1884 = vmatpush1.msra.mxu0 0.0
  %1885 = vmatprep.subr.mxu0 0.0
  %1886 = vmatpush1.msra.mxu0 0.0
  %1887 = vmatprep.subr.mxu0 0.0
  %1888 = vmatpush1.msra.mxu0 0.0
  %1889 = vmatprep.subr.mxu0 0.0
  %1890 = vmatpush1.msra.mxu0 0.0
  %1891 = vmatprep.subr.mxu0 0.0
  %1892 = vmatpush1.msra.mxu0 0.0
  %1893 = vmatprep.subr.mxu0 0.0
  %1894 = vmatpush1.msra.mxu0 0.0
  %1895 = vmatprep.subr.mxu0 0.0
  %1896 = vmatpush1.msra.mxu0 0.0
  %1897 = vmatprep.subr.mxu0 0.0
  %1898 = vmatpush1.msra.mxu0 0.0
  %1899 = vmatprep.subr.mxu0 0.0
  %1900 = vmatpush1.msra.mxu0 0.0
  %1901 = vmatprep.mubr.f32.mxu0 0.0
  %1902 = vmatmul.mubr.f32.gmra.mrb[0].mxu0 %v1835
  %v1903 = vpop.f32.mrb[0].mxu0
  %v1904 = vadd.f32 0.0, %v1903
  %v1905 = vpop.f32.mrb[0].mxu0
  %1906 = vdwg.mxu0
  %1909 = vrot.lane.b32.xlu0 %v1828, 16
  %v1910 = vpop.permute.xlu0 %1909
  %1911 = vrot.lane.b32.xlu0 %v1904, 16
  %v1912 = vpop.permute.xlu0 %1911
  %v1915 = vsel %vm128, %v1498, %v1910
  %v1916 = vsel %vm128, %v1574, %v1912
  %s1917 = scalar_lea.vmem %s2, 32
  %v1918 = vld [vmem:[%s1917] sm:$0xff]
  %v1919 = vld [vmem:[%s1917 + $0x8] sm:$0xff]
  %v1920 = vld [vmem:[%s1917 + $0x10] sm:$0xff]
  %v1921 = vld [vmem:[%s1917 + $0x18] sm:$0xff]
  %v1922 = vlaneseq
  %v1923 = vshrl.u32 %v1922, 7
  %v1924 = vsub.s32 0, %v1923
  %v1925 = vrot.slane %v1154, %v1924
  %v1927 = vsel %vm43, %v1915, 0
  %v1930 = vsel %vm43, %v1916, 0
  %1932 = vmatprep.subr.mxu0 0.0
  %1933 = vmatpush1.msra.mxu0 %v1918
  %1934 = vmatprep.subr.mxu0 0.0
  %1935 = vmatpush1.msra.mxu0 %v1919
  %1936 = vmatprep.subr.mxu0 0.0
  %1937 = vmatpush1.msra.mxu0 %v1920
  %1938 = vmatprep.subr.mxu0 0.0
  %1939 = vmatpush1.msra.mxu0 %v1921
  %1940 = vmatprep.subr.mxu0 0.0
  %1941 = vmatpush1.msra.mxu0 0.0
  %1942 = vmatprep.subr.mxu0 0.0
  %1943 = vmatpush1.msra.mxu0 0.0
  %1944 = vmatprep.subr.mxu0 0.0
  %1945 = vmatpush1.msra.mxu0 0.0
  %1946 = vmatprep.subr.mxu0 0.0
  %1947 = vmatpush1.msra.mxu0 0.0
  %1948 = vmatprep.subr.mxu0 0.0
  %1949 = vmatpush1.msra.mxu0 0.0
  %1950 = vmatprep.subr.mxu0 0.0
  %1951 = vmatpush1.msra.mxu0 0.0
  %1952 = vmatprep.subr.mxu0 0.0
  %1953 = vmatpush1.msra.mxu0 0.0
  %1954 = vmatprep.subr.mxu0 0.0
  %1955 = vmatpush1.msra.mxu0 0.0
  %1956 = vmatprep.subr.mxu0 0.0
  %1957 = vmatpush1.msra.mxu0 0.0
  %1958 = vmatprep.subr.mxu0 0.0
  %1959 = vmatpush1.msra.mxu0 0.0
  %1960 = vmatprep.subr.mxu0 0.0
  %1961 = vmatpush1.msra.mxu0 0.0
  %1962 = vmatprep.subr.mxu0 0.0
  %1963 = vmatpush1.msra.mxu0 0.0
  %1964 = vmatprep.subr.mxu0 0.0
  %1965 = vmatpush1.msra.mxu0 0.0
  %1966 = vmatprep.subr.mxu0 0.0
  %1967 = vmatpush1.msra.mxu0 0.0
  %1968 = vmatprep.subr.mxu0 0.0
  %1969 = vmatpush1.msra.mxu0 0.0
  %1970 = vmatprep.subr.mxu0 0.0
  %1971 = vmatpush1.msra.mxu0 0.0
  %1972 = vmatprep.subr.mxu0 0.0
  %1973 = vmatpush1.msra.mxu0 0.0
  %1974 = vmatprep.subr.mxu0 0.0
  %1975 = vmatpush1.msra.mxu0 0.0
  %1976 = vmatprep.subr.mxu0 0.0
  %1977 = vmatpush1.msra.mxu0 0.0
  %1978 = vmatprep.subr.mxu0 0.0
  %1979 = vmatpush1.msra.mxu0 0.0
  %1980 = vmatprep.subr.mxu0 0.0
  %1981 = vmatpush1.msra.mxu0 0.0
  %1982 = vmatprep.subr.mxu0 0.0
  %1983 = vmatpush1.msra.mxu0 0.0
  %1984 = vmatprep.subr.mxu0 0.0
  %1985 = vmatpush1.msra.mxu0 0.0
  %1986 = vmatprep.subr.mxu0 0.0
  %1987 = vmatpush1.msra.mxu0 0.0
  %1988 = vmatprep.subr.mxu0 0.0
  %1989 = vmatpush1.msra.mxu0 0.0
  %1990 = vmatprep.subr.mxu0 0.0
  %1991 = vmatpush1.msra.mxu0 0.0
  %1992 = vmatprep.subr.mxu0 0.0
  %1993 = vmatpush1.msra.mxu0 0.0
  %1994 = vmatprep.subr.mxu0 0.0
  %1995 = vmatpush1.msra.mxu0 0.0
  %1996 = vmatprep.mubr.f32.mxu0 0.0
  %1997 = vmatmul.mubr.f32.gmra.mrb[0].mxu0 %v1927
  %v1998 = vpop.f32.mrb[0].mxu0
  %v1999 = vadd.f32 %v1925, %v1998
  %v2000 = vpop.f32.mrb[0].mxu0
  %2001 = vmatprep.mubr.f32.mxu0 0.0
  %2002 = vmatmul.mubr.f32.gmra.mrb[0].mxu0 %v1930
  %v2003 = vpop.f32.mrb[0].mxu0
  %v2004 = vadd.f32 %v1925, %v2003
  %v2005 = vpop.f32.mrb[0].mxu0
  %2006 = vdwg.mxu0
  %v2007 = vadd.f32 %v1151, %v1999
  %v2008 = vadd.f32 %v1152, %v2004
  %v2009 = vsel %vm43, %v2007, 0.0
  %2010 = vadd.xlane.f32.xlu0 %v2009
  %v2011 = vpop.xlane.xlu0 %2010
  %v2012 = vsel %vm43, %v2008, 0.0
  %2013 = vadd.xlane.f32.xlu0 %v2012
  %v2014 = vpop.xlane.xlu0 %2013
  %v2015 = vmul.f32 %v2011, %v892
  %v2016 = vmul.f32 %v2014, %v892
  %v2017 = vsub.f32 %v2007, %v2015
  %v2018 = vsub.f32 %v2008, %v2016
  %v2019 = vmul.f32 %v2017, %v2017
  %v2020 = vmul.f32 %v2018, %v2018
  %v2021 = vsel %vm43, %v2019, 0.0
  %2022 = vadd.xlane.f32.xlu0 %v2021
  %v2023 = vpop.xlane.xlu0 %2022
  %v2024 = vsel %vm43, %v2020, 0.0
  %2025 = vadd.xlane.f32.xlu0 %v2024
  %v2026 = vpop.xlane.xlu0 %2025
  %v2027 = vmul.f32 %v2023, %v892
  %v2028 = vmul.f32 %v2026, %v892
  %v2029 = vadd.f32 %v2027, 1e-05
  %v2030 = vadd.f32 %v2028, 1e-05
  %v2031 = vrsqrt.pop %v2029
  %v2032 = vrsqrt.pop %v2030
  %v2033 = vmul.f32 %v2017, %v2031
  %v2034 = vmul.f32 %v2018, %v2032
  %v2035 = vlaneseq
  %v2036 = vshrl.u32 %v2035, 7
  %v2037 = vsub.s32 1, %v2036
  %v2038 = vrot.slane %v1154, %v2037
  %v2039 = vmul.f32 %v2033, %v2038
  %v2040 = vmul.f32 %v2034, %v2038
  %v2041 = vlaneseq
  %v2042 = vshrl.u32 %v2041, 7
  %v2043 = vsub.s32 2, %v2042
  %v2044 = vrot.slane %v1154, %v2043
  %v2045 = vadd.f32 %v2039, %v2044
  %v2046 = vadd.f32 %v2040, %v2044
  %s2047 = scalar_lea.vmem %s3, 32
  %v2048 = vld [vmem:[%s2047] sm:$0xff]
  %v2049 = vld [vmem:[%s2047 + $0x8] sm:$0xff]
  %v2050 = vld [vmem:[%s2047 + $0x10] sm:$0xff]
  %v2051 = vld [vmem:[%s2047 + $0x18] sm:$0xff]
  %s2052 = scalar_lea.vmem %s6, 1
  %v2053 = vld [vmem:[%s2052] sm:$0x1]
  %v2055 = vlaneseq
  %v2056 = vshrl.u32 %v2055, 7
  %v2057 = vsub.s32 0, %v2056
  %v2058 = vrot.slane %v2053, %v2057
  %v2061 = vsel %vm43, %v2045, 0
  %v2064 = vsel %vm43, %v2046, 0
  %2066 = vmatprep.subr.mxu0 0.0
  %2067 = vmatpush1.msra.mxu0 %v2048
  %2068 = vmatprep.subr.mxu0 0.0
  %2069 = vmatpush1.msra.mxu0 %v2049
  %2070 = vmatprep.subr.mxu0 0.0
  %2071 = vmatpush1.msra.mxu0 %v2050
  %2072 = vmatprep.subr.mxu0 0.0
  %2073 = vmatpush1.msra.mxu0 %v2051
  %2074 = vmatprep.subr.mxu0 0.0
  %2075 = vmatpush1.msra.mxu0 0.0
  %2076 = vmatprep.subr.mxu0 0.0
  %2077 = vmatpush1.msra.mxu0 0.0
  %2078 = vmatprep.subr.mxu0 0.0
  %2079 = vmatpush1.msra.mxu0 0.0
  %2080 = vmatprep.subr.mxu0 0.0
  %2081 = vmatpush1.msra.mxu0 0.0
  %2082 = vmatprep.subr.mxu0 0.0
  %2083 = vmatpush1.msra.mxu0 0.0
  %2084 = vmatprep.subr.mxu0 0.0
  %2085 = vmatpush1.msra.mxu0 0.0
  %2086 = vmatprep.subr.mxu0 0.0
  %2087 = vmatpush1.msra.mxu0 0.0
  %2088 = vmatprep.subr.mxu0 0.0
  %2089 = vmatpush1.msra.mxu0 0.0
  %2090 = vmatprep.subr.mxu0 0.0
  %2091 = vmatpush1.msra.mxu0 0.0
  %2092 = vmatprep.subr.mxu0 0.0
  %2093 = vmatpush1.msra.mxu0 0.0
  %2094 = vmatprep.subr.mxu0 0.0
  %2095 = vmatpush1.msra.mxu0 0.0
  %2096 = vmatprep.subr.mxu0 0.0
  %2097 = vmatpush1.msra.mxu0 0.0
  %2098 = vmatprep.subr.mxu0 0.0
  %2099 = vmatpush1.msra.mxu0 0.0
  %2100 = vmatprep.subr.mxu0 0.0
  %2101 = vmatpush1.msra.mxu0 0.0
  %2102 = vmatprep.subr.mxu0 0.0
  %2103 = vmatpush1.msra.mxu0 0.0
  %2104 = vmatprep.subr.mxu0 0.0
  %2105 = vmatpush1.msra.mxu0 0.0
  %2106 = vmatprep.subr.mxu0 0.0
  %2107 = vmatpush1.msra.mxu0 0.0
  %2108 = vmatprep.subr.mxu0 0.0
  %2109 = vmatpush1.msra.mxu0 0.0
  %2110 = vmatprep.subr.mxu0 0.0
  %2111 = vmatpush1.msra.mxu0 0.0
  %2112 = vmatprep.subr.mxu0 0.0
  %2113 = vmatpush1.msra.mxu0 0.0
  %2114 = vmatprep.subr.mxu0 0.0
  %2115 = vmatpush1.msra.mxu0 0.0
  %2116 = vmatprep.subr.mxu0 0.0
  %2117 = vmatpush1.msra.mxu0 0.0
  %2118 = vmatprep.subr.mxu0 0.0
  %2119 = vmatpush1.msra.mxu0 0.0
  %2120 = vmatprep.subr.mxu0 0.0
  %2121 = vmatpush1.msra.mxu0 0.0
  %2122 = vmatprep.subr.mxu0 0.0
  %2123 = vmatpush1.msra.mxu0 0.0
  %2124 = vmatprep.subr.mxu0 0.0
  %2125 = vmatpush1.msra.mxu0 0.0
  %2126 = vmatprep.subr.mxu0 0.0
  %2127 = vmatpush1.msra.mxu0 0.0
  %2128 = vmatprep.subr.mxu0 0.0
  %2129 = vmatpush1.msra.mxu0 0.0
  %2130 = vmatprep.mubr.f32.mxu0 0.0
  %2131 = vmatmul.mubr.f32.gmra.mrb[0].mxu0 %v2061
  %v2132 = vpop.f32.mrb[0].mxu0
  %v2133 = vadd.f32 %v2058, %v2132
  %v2134 = vpop.f32.mrb[0].mxu0
  %2135 = vmatprep.mubr.f32.mxu0 0.0
  %2136 = vmatmul.mubr.f32.gmra.mrb[0].mxu0 %v2064
  %v2137 = vpop.f32.mrb[0].mxu0
  %v2138 = vadd.f32 %v2058, %v2137
  %v2139 = vpop.f32.mrb[0].mxu0
  %2140 = vdwg.mxu0
  %v2141 = vmax.f32 %v2133, 0.0
  %v2142 = vmax.f32 %v2138, 0.0
  %s2143 = scalar_lea.vmem %s4, 64
  %v2144 = vld [vmem:[%s2143] sm:$0xff]
  %v2145 = vld [vmem:[%s2143 + $0x8] sm:$0xff]
  %v2146 = vld [vmem:[%s2143 + $0x10] sm:$0xff]
  %v2147 = vld [vmem:[%s2143 + $0x18] sm:$0xff]
  %v2148 = vld [vmem:[%s2143 + $0x20] sm:$0xff]
  %v2149 = vld [vmem:[%s2143 + $0x28] sm:$0xff]
  %v2150 = vld [vmem:[%s2143 + $0x30] sm:$0xff]
  %v2151 = vld [vmem:[%s2143 + $0x38] sm:$0xff]
  %v2152 = vlaneseq
  %v2153 = vshrl.u32 %v2152, 7
  %v2154 = vsub.s32 3, %v2153
  %v2155 = vrot.slane %v1154, %v2154
  %v2157 = vsel %vm1031, %v2141, 0
  %v2160 = vsel %vm1031, %v2142, 0
  %2162 = vmatprep.subr.mxu0 0.0
  %2163 = vmatpush1.msra.mxu0 %v2144
  %2164 = vmatprep.subr.mxu0 0.0
  %2165 = vmatpush1.msra.mxu0 %v2145
  %2166 = vmatprep.subr.mxu0 0.0
  %2167 = vmatpush1.msra.mxu0 %v2146
  %2168 = vmatprep.subr.mxu0 0.0
  %2169 = vmatpush1.msra.mxu0 %v2147
  %2170 = vmatprep.subr.mxu0 0.0
  %2171 = vmatpush1.msra.mxu0 %v2148
  %2172 = vmatprep.subr.mxu0 0.0
  %2173 = vmatpush1.msra.mxu0 %v2149
  %2174 = vmatprep.subr.mxu0 0.0
  %2175 = vmatpush1.msra.mxu0 %v2150
  %2176 = vmatprep.subr.mxu0 0.0
  %2177 = vmatpush1.msra.mxu0 %v2151
  %2178 = vmatprep.subr.mxu0 0.0
  %2179 = vmatpush1.msra.mxu0 0.0
  %2180 = vmatprep.subr.mxu0 0.0
  %2181 = vmatpush1.msra.mxu0 0.0
  %2182 = vmatprep.subr.mxu0 0.0
  %2183 = vmatpush1.msra.mxu0 0.0
  %2184 = vmatprep.subr.mxu0 0.0
  %2185 = vmatpush1.msra.mxu0 0.0
  %2186 = vmatprep.subr.mxu0 0.0
  %2187 = vmatpush1.msra.mxu0 0.0
  %2188 = vmatprep.subr.mxu0 0.0
  %2189 = vmatpush1.msra.mxu0 0.0
  %2190 = vmatprep.subr.mxu0 0.0
  %2191 = vmatpush1.msra.mxu0 0.0
  %2192 = vmatprep.subr.mxu0 0.0
  %2193 = vmatpush1.msra.mxu0 0.0
  %2194 = vmatprep.subr.mxu0 0.0
  %2195 = vmatpush1.msra.mxu0 0.0
  %2196 = vmatprep.subr.mxu0 0.0
  %2197 = vmatpush1.msra.mxu0 0.0
  %2198 = vmatprep.subr.mxu0 0.0
  %2199 = vmatpush1.msra.mxu0 0.0
  %2200 = vmatprep.subr.mxu0 0.0
  %2201 = vmatpush1.msra.mxu0 0.0
  %2202 = vmatprep.subr.mxu0 0.0
  %2203 = vmatpush1.msra.mxu0 0.0
  %2204 = vmatprep.subr.mxu0 0.0
  %2205 = vmatpush1.msra.mxu0 0.0
  %2206 = vmatprep.subr.mxu0 0.0
  %2207 = vmatpush1.msra.mxu0 0.0
  %2208 = vmatprep.subr.mxu0 0.0
  %2209 = vmatpush1.msra.mxu0 0.0
  %2210 = vmatprep.subr.mxu0 0.0
  %2211 = vmatpush1.msra.mxu0 0.0
  %2212 = vmatprep.subr.mxu0 0.0
  %2213 = vmatpush1.msra.mxu0 0.0
  %2214 = vmatprep.subr.mxu0 0.0
  %2215 = vmatpush1.msra.mxu0 0.0
  %2216 = vmatprep.subr.mxu0 0.0
  %2217 = vmatpush1.msra.mxu0 0.0
  %2218 = vmatprep.subr.mxu0 0.0
  %2219 = vmatpush1.msra.mxu0 0.0
  %2220 = vmatprep.subr.mxu0 0.0
  %2221 = vmatpush1.msra.mxu0 0.0
  %2222 = vmatprep.subr.mxu0 0.0
  %2223 = vmatpush1.msra.mxu0 0.0
  %2224 = vmatprep.subr.mxu0 0.0
  %2225 = vmatpush1.msra.mxu0 0.0
  %2226 = vmatprep.mubr.f32.mxu0 0.0
  %2227 = vmatmul.mubr.f32.gmra.mrb[0].mxu0 %v2157
  %v2228 = vpop.f32.mrb[0].mxu0
  %v2229 = vadd.f32 %v2155, %v2228
  %v2230 = vpop.f32.mrb[0].mxu0
  %2231 = vmatprep.mubr.f32.mxu0 0.0
  %2232 = vmatmul.mubr.f32.gmra.mrb[0].mxu0 %v2160
  %v2233 = vpop.f32.mrb[0].mxu0
  %v2234 = vadd.f32 %v2155, %v2233
  %v2235 = vpop.f32.mrb[0].mxu0
  %2236 = vdwg.mxu0
  %v2237 = vadd.f32 %v2045, %v2229
  %v2238 = vadd.f32 %v2046, %v2234
  %v2239 = vsel %vm43, %v2237, 0.0
  %2240 = vadd.xlane.f32.xlu0 %v2239
  %v2241 = vpop.xlane.xlu0 %2240
  %v2242 = vsel %vm43, %v2238, 0.0
  %2243 = vadd.xlane.f32.xlu0 %v2242
  %v2244 = vpop.xlane.xlu0 %2243
  %v2245 = vmul.f32 %v2241, %v892
  %v2246 = vmul.f32 %v2244, %v892
  %v2247 = vsub.f32 %v2237, %v2245
  %v2248 = vsub.f32 %v2238, %v2246
  %v2249 = vmul.f32 %v2247, %v2247
  %v2250 = vmul.f32 %v2248, %v2248
  %v2251 = vsel %vm43, %v2249, 0.0
  %2252 = vadd.xlane.f32.xlu0 %v2251
  %v2253 = vpop.xlane.xlu0 %2252
  %v2254 = vsel %vm43, %v2250, 0.0
  %2255 = vadd.xlane.f32.xlu0 %v2254
  %v2256 = vpop.xlane.xlu0 %2255
  %v2257 = vmul.f32 %v2253, %v892
  %v2258 = vmul.f32 %v2256, %v892
  %v2259 = vadd.f32 %v2257, 1e-05
  %v2260 = vadd.f32 %v2258, 1e-05
  %v2261 = vrsqrt.pop %v2259
  %v2262 = vrsqrt.pop %v2260
  %v2263 = vmul.f32 %v2247, %v2261
  %v2264 = vmul.f32 %v2248, %v2262
  %v2265 = vlaneseq
  %v2266 = vshrl.u32 %v2265, 7
  %v2267 = vsub.s32 4, %v2266
  %v2268 = vrot.slane %v1154, %v2267
  %v2269 = vmul.f32 %v2263, %v2268
  %v2270 = vmul.f32 %v2264, %v2268
  %v2271 = vlaneseq
  %v2272 = vshrl.u32 %v2271, 7
  %v2273 = vsub.s32 5, %v2272
  %v2274 = vrot.slane %v1154, %v2273
  %v2275 = vadd.f32 %v2269, %v2274
  %v2276 = vadd.f32 %v2270, %v2274
  %2277 = vst.msk [vmem:[%s8] sm:$0xff] %vm43, %v2275
  %2278 = vst.msk [vmem:[%s8 + $0x8] sm:$0xff] %vm43, %v2276
  // Predicated region
  $region34: #{mix_transformer_pallas.1} parent=0 // pred_check
    _
  $region35: #{mix_transformer_pallas.1} parent=0 // pred_check_branch
    %2280 = sbr.rel (0) target = $region37
  $region36: #{mix_transformer_pallas.1} parent=0 // pred_region
    _
  $region37: #{mix_transformer_pallas.1} parent=0 // pred_fallthru
    _
  // Predicated region
  $region38: #{mix_transformer_pallas.1} parent=0 // pred_check
    _
  $region39: #{mix_transformer_pallas.1} parent=0 // pred_check_branch
    %2282 = sbr.rel (0) target = $region41
  $region40: #{mix_transformer_pallas.1} parent=0 // pred_region
    _
  $region41: #{mix_transformer_pallas.1} parent=0 // pred_fallthru
    _

</llo_original>
